<compile_context>
chip_gen: v7x
topology: tpu7x:2x2x1
jax: 0.10.0
libtpu: 0.0.40
codegen_flags: <defaults>
</compile_context>

<pallas_src>
import jax
import jax.numpy as jnp
from jax import lax
from jax.experimental import pallas as pl
from jax.experimental.pallas import tpu as pltpu


def static_embedding_forward(input_ids, attention_mask, token_type_ids,
                             word_emb, pos_emb, type_emb, gamma, beta,
                             *, seqs_per_step=None, core_split=2,
                             hidden_dtype=jnp.float32):
    B, S = input_ids.shape
    V, H = word_emb.shape
    TT = type_emb.shape[0]

    # ---- how many sequences to fuse per grid step ----
    if seqs_per_step is None:
        seqs_per_step = max(1, 256 // S)          # target ~256 gathered rows / step
    TB = max(1, min(B, seqs_per_step))
    while B % TB:                                  # must divide the batch
        TB -= 1
    N = TB * S                                     # embedding rows handled per step
    num_steps = B // TB
    G0 = core_split if (num_steps % core_split == 0 and num_steps >= core_split) else 1
    G1 = num_steps // G0

    # ---- host-side plumbing (no vocab-sized astype: tables keep native dtype) ----
    ids_steps = input_ids.astype(jnp.int32).reshape(num_steps, N)     # SMEM prefetch
    mask_col = attention_mask.reshape(B * S, 1).astype(jnp.float32)
    tt_col = token_type_ids.reshape(B * S, 1).astype(jnp.int32)
    pos_tiled = jnp.tile(pos_emb[:S], (TB, 1))                        # (N, H) native dtype
    gamma2 = gamma.reshape(1, H).astype(jnp.float32)
    beta2 = beta.reshape(1, H).astype(jnp.float32)

    def kernel(ids_ref,                                   # SMEM (num_steps, N) int32
               mask_ref, tt_ref, pos_ref, gamma_ref, beta_ref, temb_ref,
               wemb_hbm,                                  # HBM (pl.ANY) word table
               hid_ref, mean_ref,                         # outputs: (N, H), (TB, 1, H)
               word_buf, sem):                            # scratch: (2, N, H), DMA sems (2,)
        i = pl.program_id(0)
        j = pl.program_id(1)
        step = i * G1 + j
        slot = j % 2

        def for_each_row(fn):
            if N <= 32:
                # Fully unrolled: lets the scheduler co-issue descriptor pushes with
                # the scalar index reads.
                for r in range(N):
                    fn(r)
            else:
                pl.loop(0, N)(fn)

        def row_copy(target_step, buf_slot, r):
            tok = ids_ref[target_step, r]
            return pltpu.make_async_copy(
                wemb_hbm.at[pl.ds(tok, 1), :],
                word_buf.at[buf_slot, pl.ds(r, 1), :],
                sem.at[buf_slot])

        def issue_gather(target_step, buf_slot):
            for_each_row(lambda r: row_copy(target_step, buf_slot, r).start())

        # Prime the pipeline at the start of every core-local sequential range.
        @pl.when(j == 0)
        def _prime():
            issue_gather(step, slot)

        # Wait for this step's word-row gathers (identical descriptors to the starts).
        for_each_row(lambda r: row_copy(step, slot, r).wait())

        # Prefetch the next step's gathers so they overlap compute + output writeback.
        @pl.when(j + 1 < pl.num_programs(1))
        def _prefetch():
            issue_gather(step + 1, 1 - slot)

        # ---- embedding sum (f32 compute; tables transported in native dtype) ----
        word = word_buf[slot].astype(jnp.float32)                     # (N, H)
        emb = word + pos_ref[...].astype(jnp.float32)
        temb = temb_ref[...].astype(jnp.float32)                      # (TT, H) resident
        tt = tt_ref[...]                                              # (N, 1) int32
        for t in range(TT):          # static VPU blend — replaces per-row type DMAs
            emb = emb + jnp.where(tt == t, temb[t:t + 1, :], 0.0)

        # ---- LayerNorm over hidden dim (BERT eps = 1e-12) ----
        mu = jnp.mean(emb, axis=-1, keepdims=True)
        var = jnp.mean(jnp.square(emb - mu), axis=-1, keepdims=True)
        hid = (emb - mu) * lax.rsqrt(var + 1e-12) * gamma_ref[...] + beta_ref[...]
        hid_ref[...] = hid.astype(hid_ref.dtype)

        # ---- masked mean pooling per sequence (aligned static S-row slabs) ----
        mask = mask_ref[...]                                          # (N, 1) f32
        masked = hid * mask
        for t in range(TB):
            seg = masked[t * S:(t + 1) * S, :]                        # (S, H)
            mseg = mask[t * S:(t + 1) * S, :]
            ssum = jnp.sum(seg, axis=0, keepdims=True)                # (1, H)
            slen = jnp.maximum(jnp.sum(mseg), 1e-9)
            mean_ref[t] = (ssum / slen).astype(mean_ref.dtype)

    idx2 = lambda i, j, ids: (i * G1 + j, 0)
    grid_spec = pltpu.PrefetchScalarGridSpec(
        num_scalar_prefetch=1,
        grid=(G0, G1),
        in_specs=[
            pl.BlockSpec((N, 1), idx2),                               # attention mask col
            pl.BlockSpec((N, 1), idx2),                               # token-type col
            pl.BlockSpec((N, H), lambda i, j, ids: (0, 0)),           # pos_emb (resident)
            pl.BlockSpec((1, H), lambda i, j, ids: (0, 0)),           # gamma
            pl.BlockSpec((1, H), lambda i, j, ids: (0, 0)),           # beta
            pl.BlockSpec((TT, H), lambda i, j, ids: (0, 0)),          # type table (resident)
            pl.BlockSpec(memory_space=pl.ANY),                        # word_emb (HBM)
        ],
        out_specs=(
            pl.BlockSpec((N, H), idx2),                               # hidden states (flat)
            pl.BlockSpec((TB, 1, H), lambda i, j, ids: (i * G1 + j, 0, 0)),
        ),
        scratch_shapes=[
            pltpu.VMEM((2, N, H), word_emb.dtype),                    # double-buffered gathers
            pltpu.SemaphoreType.DMA((2,)),                            # one sem per buffer slot
        ],
    )

    # ---- explicit VMEM budget when blocks are large (re-derived for v7x 64 MiB) ----
    def _nbytes(shape, dtype):
        n = 1
        for d in shape:
            n *= d
        return n * jnp.dtype(dtype).itemsize

    est = (2 * _nbytes((N, H), word_emb.dtype)
           + 2 * _nbytes((N, H), pos_tiled.dtype)
           + 2 * _nbytes((TT, H), type_emb.dtype)
           + 2 * _nbytes((N, H), hidden_dtype)
           + 2 * _nbytes((TB, 1, H), jnp.float32)
           + 4 * _nbytes((N, 1), jnp.float32)
           + 4 * _nbytes((1, H), jnp.float32))
    compiler_kwargs = dict(dimension_semantics=("parallel", "arbitrary"))
    if est > (8 << 20):
        compiler_kwargs["vmem_limit_bytes"] = int(min(2 * est + (4 << 20), 64 << 20))

    hid_flat, mean3 = pl.pallas_call(
        kernel,
        out_shape=(jax.ShapeDtypeStruct((B * S, H), hidden_dtype),
                   jax.ShapeDtypeStruct((B, 1, H), jnp.float32)),
        grid_spec=grid_spec,
        compiler_params=pltpu.CompilerParams(**compiler_kwargs),
    )(ids_steps, mask_col, tt_col, pos_tiled, gamma2, beta2, type_emb, word_emb)

    return {
        'last_hidden_states': hid_flat.reshape(B, S, H),
        'mean_dense_embedding': mean3.reshape(B, H),
        'attention_mask': attention_mask,
    }


def _reference(input_ids, attention_mask, token_type_ids,
               word_emb, pos_emb, type_emb, gamma, beta):
    S = input_ids.shape[1]
    emb = (word_emb.astype(jnp.float32)[input_ids]
           + pos_emb.astype(jnp.float32)[:S][None, :, :]
           + type_emb.astype(jnp.float32)[token_type_ids])
    mu = emb.mean(-1, keepdims=True)
    var = ((emb - mu) ** 2).mean(-1, keepdims=True)
    hid = (emb - mu) / jnp.sqrt(var + 1e-12) * gamma + beta
    m = attention_mask.astype(jnp.float32)[..., None]
    mean = (hid * m).sum(1) / jnp.maximum(m.sum(1), 1e-9)
    return hid, mean


if __name__ == "__main__":
    # Small synthetic shapes consistent with a BERT-style embedding layer.
    B, S, H, V, TT = 2, 8, 128, 128, 8    # TT padded to 8; only type ids 0/1 used

    key = jax.random.PRNGKey(0)
    k_ids, k_w, k_p, k_t, k_b = jax.random.split(key, 5)

    input_ids = jax.random.randint(k_ids, (B, S), 0, V, dtype=jnp.int32)
    token_type_ids = jnp.zeros((B, S), dtype=jnp.int32).at[1, 4:].set(1)
    attention_mask = jnp.array(
        [[1, 1, 1, 1, 1, 1, 0, 0],
         [1, 1, 1, 0, 0, 0, 0, 0]], dtype=jnp.int32)

    word_emb = 0.02 * jax.random.normal(k_w, (V, H), dtype=jnp.float32)
    # pos / type tables in bf16 to exercise native-dtype transport (cast to f32 in-kernel).
    pos_emb = (0.02 * jax.random.normal(k_p, (S, H), dtype=jnp.float32)).astype(jnp.bfloat16)
    type_emb = (jnp.zeros((TT, H), jnp.float32)
                .at[:2].set(0.02 * jax.random.normal(k_t, (2, H), dtype=jnp.float32))
                ).astype(jnp.bfloat16)
    gamma = jnp.ones((H,), jnp.float32)
    beta = 0.01 * jax.random.normal(k_b, (H,), dtype=jnp.float32)

    feats = static_embedding_forward(input_ids, attention_mask, token_type_ids,
                                     word_emb, pos_emb, type_emb, gamma, beta)
    hid = jax.block_until_ready(feats['last_hidden_states'])
    mean = jax.block_until_ready(feats['mean_dense_embedding'])

    ref_hid, ref_mean = _reference(input_ids, attention_mask, token_type_ids,
                                   word_emb, pos_emb, type_emb, gamma, beta)
    assert hid.shape == (B, S, H) and mean.shape == (B, H)
    assert jnp.allclose(hid, ref_hid, atol=2e-4, rtol=2e-4), "hidden states mismatch"
    assert jnp.allclose(mean, ref_mean, atol=2e-4, rtol=2e-4), "pooled mean mismatch"

    # TODO(synk): tokenizer / HF checkpoint loading / torch DataParallel from the original
    # module have no kernel equivalent; weights are supplied as arrays.
    print("KERNEL_OK")
</pallas_src>

<mosaic_0001>
module attributes {stable_mosaic.version = 11 : i64} {
  func.func @kernel(%arg0: i32, %arg1: i32, %arg2: memref<1x16xi32, #tpu.memory_space<smem>>, %arg3: memref<16x1xf32, #tpu.memory_space<vmem>>, %arg4: memref<16x1xi32, #tpu.memory_space<vmem>>, %arg5: memref<16x128xbf16, #tpu.memory_space<vmem>>, %arg6: memref<1x128xf32, #tpu.memory_space<vmem>>, %arg7: memref<1x128xf32, #tpu.memory_space<vmem>>, %arg8: memref<8x128xbf16, #tpu.memory_space<vmem>>, %arg9: memref<128x128xf32, #tpu.memory_space<any>>, %arg10: memref<16x128xf32, #tpu.memory_space<vmem>>, %arg11: memref<2x1x128xf32, #tpu.memory_space<vmem>>, %arg12: memref<2x16x128xf32, #tpu.memory_space<vmem>>, %arg13: memref<2x!tpu.dma_semaphore, #tpu.memory_space<semaphore_mem>>) attributes {dimension_semantics = [#tpu.dimension_semantics<parallel>, #tpu.dimension_semantics<arbitrary>], iteration_bounds = array<i64: 1, 1>, scalar_prefetch = 1 : i64, scratch_operands = 2 : i64, tpu.core_type = #tpu.core_type<tc>, window_params = [{transform_indices = @transform_0, window_bounds = array<i64: 16, 1>}, {transform_indices = @transform_1, window_bounds = array<i64: 16, 1>}, {pipeline_mode = #tpu.pipeline_mode<synchronous>, transform_indices = @transform_2, window_bounds = array<i64: 16, 128>}, {pipeline_mode = #tpu.pipeline_mode<synchronous>, transform_indices = @transform_3, window_bounds = array<i64: 1, 128>}, {pipeline_mode = #tpu.pipeline_mode<synchronous>, transform_indices = @transform_4, window_bounds = array<i64: 1, 128>}, {pipeline_mode = #tpu.pipeline_mode<synchronous>, transform_indices = @transform_5, window_bounds = array<i64: 8, 128>}, {}, {transform_indices = @transform_7, window_bounds = array<i64: 16, 128>}, {transform_indices = @transform_8, window_bounds = array<i64: 2, 1, 128>}]} {
    %c1_i32 = arith.constant 1 : i32
    %0 = arith.muli %arg0, %c1_i32 : i32
    %1 = arith.addi %0, %arg1 : i32
    %c2_i32 = arith.constant 2 : i32
    %c0_i32 = arith.constant 0 : i32
    %2 = arith.cmpi eq, %c2_i32, %c0_i32 : i32
    %c1_i32_0 = arith.constant 1 : i32
    %3 = arith.select %2, %c1_i32_0, %c2_i32 : i32
    %4 = arith.remsi %arg1, %3 : i32
    %c0_i32_1 = arith.constant 0 : i32
    %5 = arith.cmpi ne, %4, %c0_i32_1 : i32
    %c0_i32_2 = arith.constant 0 : i32
    %6 = arith.cmpi slt, %4, %c0_i32_2 : i32
    %c0_i32_3 = arith.constant 0 : i32
    %7 = arith.cmpi slt, %3, %c0_i32_3 : i32
    %8 = arith.xori %6, %7 : i1
    %9 = arith.andi %8, %5 : i1
    %10 = arith.addi %4, %3 : i32
    %11 = arith.select %9, %10, %4 : i32
    %c0_i32_4 = arith.constant 0 : i32
    %12 = arith.cmpi eq, %arg1, %c0_i32_4 : i32
    %13 = arith.extui %12 : i1 to i32
    %c0_i32_5 = arith.constant 0 : i32
    %14 = arith.cmpi ne, %13, %c0_i32_5 : i32
    scf.if %14 {
      %276 = arith.index_cast %1 : i32 to index
      %c0_92 = arith.constant 0 : index
      %277 = memref.load %arg2[%276, %c0_92] : memref<1x16xi32, #tpu.memory_space<smem>>
      %c0_i32_93 = arith.constant 0 : i32
      %278 = tpu.memref_slice %arg9[%277, %c0_i32_93] : memref<128x128xf32, #tpu.memory_space<any>> -> memref<1x128xf32, #tpu.memory_space<any>>
      %c0_i32_94 = arith.constant 0 : i32
      %c0_i32_95 = arith.constant 0 : i32
      %279 = tpu.memref_slice %arg12[%11, %c0_i32_94, %c0_i32_95] : memref<2x16x128xf32, #tpu.memory_space<vmem>> -> memref<1x1x128xf32, #tpu.memory_space<vmem>>
      %280 = tpu.memref_squeeze %279 : memref<1x1x128xf32, #tpu.memory_space<vmem>> -> memref<1x128xf32, #tpu.memory_space<vmem>>
      %281 = tpu.memref_slice %arg13[%11] : memref<2x!tpu.dma_semaphore, #tpu.memory_space<semaphore_mem>> -> memref<1x!tpu.dma_semaphore, #tpu.memory_space<semaphore_mem>>
      %282 = tpu.memref_squeeze %281 : memref<1x!tpu.dma_semaphore, #tpu.memory_space<semaphore_mem>> -> memref<!tpu.dma_semaphore, #tpu.memory_space<semaphore_mem>>
      tpu.enqueue_dma source(%278 : memref<1x128xf32, #tpu.memory_space<any>>) target(%280 : memref<1x128xf32, #tpu.memory_space<vmem>>) target_semaphore(%282 : memref<!tpu.dma_semaphore, #tpu.memory_space<semaphore_mem>>)
      %283 = arith.index_cast %1 : i32 to index
      %c1_96 = arith.constant 1 : index
      %284 = memref.load %arg2[%283, %c1_96] : memref<1x16xi32, #tpu.memory_space<smem>>
      %c0_i32_97 = arith.constant 0 : i32
      %285 = tpu.memref_slice %arg9[%284, %c0_i32_97] : memref<128x128xf32, #tpu.memory_space<any>> -> memref<1x128xf32, #tpu.memory_space<any>>
      %c1_i32_98 = arith.constant 1 : i32
      %c0_i32_99 = arith.constant 0 : i32
      %286 = tpu.memref_slice %arg12[%11, %c1_i32_98, %c0_i32_99] : memref<2x16x128xf32, #tpu.memory_space<vmem>> -> memref<1x1x128xf32, #tpu.memory_space<vmem>>
      %287 = tpu.memref_squeeze %286 : memref<1x1x128xf32, #tpu.memory_space<vmem>> -> memref<1x128xf32, #tpu.memory_space<vmem>>
      %288 = tpu.memref_slice %arg13[%11] : memref<2x!tpu.dma_semaphore, #tpu.memory_space<semaphore_mem>> -> memref<1x!tpu.dma_semaphore, #tpu.memory_space<semaphore_mem>>
      %289 = tpu.memref_squeeze %288 : memref<1x!tpu.dma_semaphore, #tpu.memory_space<semaphore_mem>> -> memref<!tpu.dma_semaphore, #tpu.memory_space<semaphore_mem>>
      tpu.enqueue_dma source(%285 : memref<1x128xf32, #tpu.memory_space<any>>) target(%287 : memref<1x128xf32, #tpu.memory_space<vmem>>) target_semaphore(%289 : memref<!tpu.dma_semaphore, #tpu.memory_space<semaphore_mem>>)
      %290 = arith.index_cast %1 : i32 to index
      %c2_100 = arith.constant 2 : index
      %291 = memref.load %arg2[%290, %c2_100] : memref<1x16xi32, #tpu.memory_space<smem>>
      %c0_i32_101 = arith.constant 0 : i32
      %292 = tpu.memref_slice %arg9[%291, %c0_i32_101] : memref<128x128xf32, #tpu.memory_space<any>> -> memref<1x128xf32, #tpu.memory_space<any>>
      %c2_i32_102 = arith.constant 2 : i32
      %c0_i32_103 = arith.constant 0 : i32
      %293 = tpu.memref_slice %arg12[%11, %c2_i32_102, %c0_i32_103] : memref<2x16x128xf32, #tpu.memory_space<vmem>> -> memref<1x1x128xf32, #tpu.memory_space<vmem>>
      %294 = tpu.memref_squeeze %293 : memref<1x1x128xf32, #tpu.memory_space<vmem>> -> memref<1x128xf32, #tpu.memory_space<vmem>>
      %295 = tpu.memref_slice %arg13[%11] : memref<2x!tpu.dma_semaphore, #tpu.memory_space<semaphore_mem>> -> memref<1x!tpu.dma_semaphore, #tpu.memory_space<semaphore_mem>>
      %296 = tpu.memref_squeeze %295 : memref<1x!tpu.dma_semaphore, #tpu.memory_space<semaphore_mem>> -> memref<!tpu.dma_semaphore, #tpu.memory_space<semaphore_mem>>
      tpu.enqueue_dma source(%292 : memref<1x128xf32, #tpu.memory_space<any>>) target(%294 : memref<1x128xf32, #tpu.memory_space<vmem>>) target_semaphore(%296 : memref<!tpu.dma_semaphore, #tpu.memory_space<semaphore_mem>>)
      %297 = arith.index_cast %1 : i32 to index
      %c3_104 = arith.constant 3 : index
      %298 = memref.load %arg2[%297, %c3_104] : memref<1x16xi32, #tpu.memory_space<smem>>
      %c0_i32_105 = arith.constant 0 : i32
      %299 = tpu.memref_slice %arg9[%298, %c0_i32_105] : memref<128x128xf32, #tpu.memory_space<any>> -> memref<1x128xf32, #tpu.memory_space<any>>
      %c3_i32_106 = arith.constant 3 : i32
      %c0_i32_107 = arith.constant 0 : i32
      %300 = tpu.memref_slice %arg12[%11, %c3_i32_106, %c0_i32_107] : memref<2x16x128xf32, #tpu.memory_space<vmem>> -> memref<1x1x128xf32, #tpu.memory_space<vmem>>
      %301 = tpu.memref_squeeze %300 : memref<1x1x128xf32, #tpu.memory_space<vmem>> -> memref<1x128xf32, #tpu.memory_space<vmem>>
      %302 = tpu.memref_slice %arg13[%11] : memref<2x!tpu.dma_semaphore, #tpu.memory_space<semaphore_mem>> -> memref<1x!tpu.dma_semaphore, #tpu.memory_space<semaphore_mem>>
      %303 = tpu.memref_squeeze %302 : memref<1x!tpu.dma_semaphore, #tpu.memory_space<semaphore_mem>> -> memref<!tpu.dma_semaphore, #tpu.memory_space<semaphore_mem>>
      tpu.enqueue_dma source(%299 : memref<1x128xf32, #tpu.memory_space<any>>) target(%301 : memref<1x128xf32, #tpu.memory_space<vmem>>) target_semaphore(%303 : memref<!tpu.dma_semaphore, #tpu.memory_space<semaphore_mem>>)
      %304 = arith.index_cast %1 : i32 to index
      %c4_108 = arith.constant 4 : index
      %305 = memref.load %arg2[%304, %c4_108] : memref<1x16xi32, #tpu.memory_space<smem>>
      %c0_i32_109 = arith.constant 0 : i32
      %306 = tpu.memref_slice %arg9[%305, %c0_i32_109] : memref<128x128xf32, #tpu.memory_space<any>> -> memref<1x128xf32, #tpu.memory_space<any>>
      %c4_i32_110 = arith.constant 4 : i32
      %c0_i32_111 = arith.constant 0 : i32
      %307 = tpu.memref_slice %arg12[%11, %c4_i32_110, %c0_i32_111] : memref<2x16x128xf32, #tpu.memory_space<vmem>> -> memref<1x1x128xf32, #tpu.memory_space<vmem>>
      %308 = tpu.memref_squeeze %307 : memref<1x1x128xf32, #tpu.memory_space<vmem>> -> memref<1x128xf32, #tpu.memory_space<vmem>>
      %309 = tpu.memref_slice %arg13[%11] : memref<2x!tpu.dma_semaphore, #tpu.memory_space<semaphore_mem>> -> memref<1x!tpu.dma_semaphore, #tpu.memory_space<semaphore_mem>>
      %310 = tpu.memref_squeeze %309 : memref<1x!tpu.dma_semaphore, #tpu.memory_space<semaphore_mem>> -> memref<!tpu.dma_semaphore, #tpu.memory_space<semaphore_mem>>
      tpu.enqueue_dma source(%306 : memref<1x128xf32, #tpu.memory_space<any>>) target(%308 : memref<1x128xf32, #tpu.memory_space<vmem>>) target_semaphore(%310 : memref<!tpu.dma_semaphore, #tpu.memory_space<semaphore_mem>>)
      %311 = arith.index_cast %1 : i32 to index
      %c5_112 = arith.constant 5 : index
      %312 = memref.load %arg2[%311, %c5_112] : memref<1x16xi32, #tpu.memory_space<smem>>
      %c0_i32_113 = arith.constant 0 : i32
      %313 = tpu.memref_slice %arg9[%312, %c0_i32_113] : memref<128x128xf32, #tpu.memory_space<any>> -> memref<1x128xf32, #tpu.memory_space<any>>
      %c5_i32_114 = arith.constant 5 : i32
      %c0_i32_115 = arith.constant 0 : i32
      %314 = tpu.memref_slice %arg12[%11, %c5_i32_114, %c0_i32_115] : memref<2x16x128xf32, #tpu.memory_space<vmem>> -> memref<1x1x128xf32, #tpu.memory_space<vmem>>
      %315 = tpu.memref_squeeze %314 : memref<1x1x128xf32, #tpu.memory_space<vmem>> -> memref<1x128xf32, #tpu.memory_space<vmem>>
      %316 = tpu.memref_slice %arg13[%11] : memref<2x!tpu.dma_semaphore, #tpu.memory_space<semaphore_mem>> -> memref<1x!tpu.dma_semaphore, #tpu.memory_space<semaphore_mem>>
      %317 = tpu.memref_squeeze %316 : memref<1x!tpu.dma_semaphore, #tpu.memory_space<semaphore_mem>> -> memref<!tpu.dma_semaphore, #tpu.memory_space<semaphore_mem>>
      tpu.enqueue_dma source(%313 : memref<1x128xf32, #tpu.memory_space<any>>) target(%315 : memref<1x128xf32, #tpu.memory_space<vmem>>) target_semaphore(%317 : memref<!tpu.dma_semaphore, #tpu.memory_space<semaphore_mem>>)
      %318 = arith.index_cast %1 : i32 to index
      %c6_116 = arith.constant 6 : index
      %319 = memref.load %arg2[%318, %c6_116] : memref<1x16xi32, #tpu.memory_space<smem>>
      %c0_i32_117 = arith.constant 0 : i32
      %320 = tpu.memref_slice %arg9[%319, %c0_i32_117] : memref<128x128xf32, #tpu.memory_space<any>> -> memref<1x128xf32, #tpu.memory_space<any>>
      %c6_i32_118 = arith.constant 6 : i32
      %c0_i32_119 = arith.constant 0 : i32
      %321 = tpu.memref_slice %arg12[%11, %c6_i32_118, %c0_i32_119] : memref<2x16x128xf32, #tpu.memory_space<vmem>> -> memref<1x1x128xf32, #tpu.memory_space<vmem>>
      %322 = tpu.memref_squeeze %321 : memref<1x1x128xf32, #tpu.memory_space<vmem>> -> memref<1x128xf32, #tpu.memory_space<vmem>>
      %323 = tpu.memref_slice %arg13[%11] : memref<2x!tpu.dma_semaphore, #tpu.memory_space<semaphore_mem>> -> memref<1x!tpu.dma_semaphore, #tpu.memory_space<semaphore_mem>>
      %324 = tpu.memref_squeeze %323 : memref<1x!tpu.dma_semaphore, #tpu.memory_space<semaphore_mem>> -> memref<!tpu.dma_semaphore, #tpu.memory_space<semaphore_mem>>
      tpu.enqueue_dma source(%320 : memref<1x128xf32, #tpu.memory_space<any>>) target(%322 : memref<1x128xf32, #tpu.memory_space<vmem>>) target_semaphore(%324 : memref<!tpu.dma_semaphore, #tpu.memory_space<semaphore_mem>>)
      %325 = arith.index_cast %1 : i32 to index
      %c7_120 = arith.constant 7 : index
      %326 = memref.load %arg2[%325, %c7_120] : memref<1x16xi32, #tpu.memory_space<smem>>
      %c0_i32_121 = arith.constant 0 : i32
      %327 = tpu.memref_slice %arg9[%326, %c0_i32_121] : memref<128x128xf32, #tpu.memory_space<any>> -> memref<1x128xf32, #tpu.memory_space<any>>
      %c7_i32_122 = arith.constant 7 : i32
      %c0_i32_123 = arith.constant 0 : i32
      %328 = tpu.memref_slice %arg12[%11, %c7_i32_122, %c0_i32_123] : memref<2x16x128xf32, #tpu.memory_space<vmem>> -> memref<1x1x128xf32, #tpu.memory_space<vmem>>
      %329 = tpu.memref_squeeze %328 : memref<1x1x128xf32, #tpu.memory_space<vmem>> -> memref<1x128xf32, #tpu.memory_space<vmem>>
      %330 = tpu.memref_slice %arg13[%11] : memref<2x!tpu.dma_semaphore, #tpu.memory_space<semaphore_mem>> -> memref<1x!tpu.dma_semaphore, #tpu.memory_space<semaphore_mem>>
      %331 = tpu.memref_squeeze %330 : memref<1x!tpu.dma_semaphore, #tpu.memory_space<semaphore_mem>> -> memref<!tpu.dma_semaphore, #tpu.memory_space<semaphore_mem>>
      tpu.enqueue_dma source(%327 : memref<1x128xf32, #tpu.memory_space<any>>) target(%329 : memref<1x128xf32, #tpu.memory_space<vmem>>) target_semaphore(%331 : memref<!tpu.dma_semaphore, #tpu.memory_space<semaphore_mem>>)
      %332 = arith.index_cast %1 : i32 to index
      %c8_124 = arith.constant 8 : index
      %333 = memref.load %arg2[%332, %c8_124] : memref<1x16xi32, #tpu.memory_space<smem>>
      %c0_i32_125 = arith.constant 0 : i32
      %334 = tpu.memref_slice %arg9[%333, %c0_i32_125] : memref<128x128xf32, #tpu.memory_space<any>> -> memref<1x128xf32, #tpu.memory_space<any>>
      %c8_i32_126 = arith.constant 8 : i32
      %c0_i32_127 = arith.constant 0 : i32
      %335 = tpu.memref_slice %arg12[%11, %c8_i32_126, %c0_i32_127] : memref<2x16x128xf32, #tpu.memory_space<vmem>> -> memref<1x1x128xf32, #tpu.memory_space<vmem>>
      %336 = tpu.memref_squeeze %335 : memref<1x1x128xf32, #tpu.memory_space<vmem>> -> memref<1x128xf32, #tpu.memory_space<vmem>>
      %337 = tpu.memref_slice %arg13[%11] : memref<2x!tpu.dma_semaphore, #tpu.memory_space<semaphore_mem>> -> memref<1x!tpu.dma_semaphore, #tpu.memory_space<semaphore_mem>>
      %338 = tpu.memref_squeeze %337 : memref<1x!tpu.dma_semaphore, #tpu.memory_space<semaphore_mem>> -> memref<!tpu.dma_semaphore, #tpu.memory_space<semaphore_mem>>
      tpu.enqueue_dma source(%334 : memref<1x128xf32, #tpu.memory_space<any>>) target(%336 : memref<1x128xf32, #tpu.memory_space<vmem>>) target_semaphore(%338 : memref<!tpu.dma_semaphore, #tpu.memory_space<semaphore_mem>>)
      %339 = arith.index_cast %1 : i32 to index
      %c9_128 = arith.constant 9 : index
      %340 = memref.load %arg2[%339, %c9_128] : memref<1x16xi32, #tpu.memory_space<smem>>
      %c0_i32_129 = arith.constant 0 : i32
      %341 = tpu.memref_slice %arg9[%340, %c0_i32_129] : memref<128x128xf32, #tpu.memory_space<any>> -> memref<1x128xf32, #tpu.memory_space<any>>
      %c9_i32_130 = arith.constant 9 : i32
      %c0_i32_131 = arith.constant 0 : i32
      %342 = tpu.memref_slice %arg12[%11, %c9_i32_130, %c0_i32_131] : memref<2x16x128xf32, #tpu.memory_space<vmem>> -> memref<1x1x128xf32, #tpu.memory_space<vmem>>
      %343 = tpu.memref_squeeze %342 : memref<1x1x128xf32, #tpu.memory_space<vmem>> -> memref<1x128xf32, #tpu.memory_space<vmem>>
      %344 = tpu.memref_slice %arg13[%11] : memref<2x!tpu.dma_semaphore, #tpu.memory_space<semaphore_mem>> -> memref<1x!tpu.dma_semaphore, #tpu.memory_space<semaphore_mem>>
      %345 = tpu.memref_squeeze %344 : memref<1x!tpu.dma_semaphore, #tpu.memory_space<semaphore_mem>> -> memref<!tpu.dma_semaphore, #tpu.memory_space<semaphore_mem>>
      tpu.enqueue_dma source(%341 : memref<1x128xf32, #tpu.memory_space<any>>) target(%343 : memref<1x128xf32, #tpu.memory_space<vmem>>) target_semaphore(%345 : memref<!tpu.dma_semaphore, #tpu.memory_space<semaphore_mem>>)
      %346 = arith.index_cast %1 : i32 to index
      %c10_132 = arith.constant 10 : index
      %347 = memref.load %arg2[%346, %c10_132] : memref<1x16xi32, #tpu.memory_space<smem>>
      %c0_i32_133 = arith.constant 0 : i32
      %348 = tpu.memref_slice %arg9[%347, %c0_i32_133] : memref<128x128xf32, #tpu.memory_space<any>> -> memref<1x128xf32, #tpu.memory_space<any>>
      %c10_i32_134 = arith.constant 10 : i32
      %c0_i32_135 = arith.constant 0 : i32
      %349 = tpu.memref_slice %arg12[%11, %c10_i32_134, %c0_i32_135] : memref<2x16x128xf32, #tpu.memory_space<vmem>> -> memref<1x1x128xf32, #tpu.memory_space<vmem>>
      %350 = tpu.memref_squeeze %349 : memref<1x1x128xf32, #tpu.memory_space<vmem>> -> memref<1x128xf32, #tpu.memory_space<vmem>>
      %351 = tpu.memref_slice %arg13[%11] : memref<2x!tpu.dma_semaphore, #tpu.memory_space<semaphore_mem>> -> memref<1x!tpu.dma_semaphore, #tpu.memory_space<semaphore_mem>>
      %352 = tpu.memref_squeeze %351 : memref<1x!tpu.dma_semaphore, #tpu.memory_space<semaphore_mem>> -> memref<!tpu.dma_semaphore, #tpu.memory_space<semaphore_mem>>
      tpu.enqueue_dma source(%348 : memref<1x128xf32, #tpu.memory_space<any>>) target(%350 : memref<1x128xf32, #tpu.memory_space<vmem>>) target_semaphore(%352 : memref<!tpu.dma_semaphore, #tpu.memory_space<semaphore_mem>>)
      %353 = arith.index_cast %1 : i32 to index
      %c11_136 = arith.constant 11 : index
      %354 = memref.load %arg2[%353, %c11_136] : memref<1x16xi32, #tpu.memory_space<smem>>
      %c0_i32_137 = arith.constant 0 : i32
      %355 = tpu.memref_slice %arg9[%354, %c0_i32_137] : memref<128x128xf32, #tpu.memory_space<any>> -> memref<1x128xf32, #tpu.memory_space<any>>
      %c11_i32_138 = arith.constant 11 : i32
      %c0_i32_139 = arith.constant 0 : i32
      %356 = tpu.memref_slice %arg12[%11, %c11_i32_138, %c0_i32_139] : memref<2x16x128xf32, #tpu.memory_space<vmem>> -> memref<1x1x128xf32, #tpu.memory_space<vmem>>
      %357 = tpu.memref_squeeze %356 : memref<1x1x128xf32, #tpu.memory_space<vmem>> -> memref<1x128xf32, #tpu.memory_space<vmem>>
      %358 = tpu.memref_slice %arg13[%11] : memref<2x!tpu.dma_semaphore, #tpu.memory_space<semaphore_mem>> -> memref<1x!tpu.dma_semaphore, #tpu.memory_space<semaphore_mem>>
      %359 = tpu.memref_squeeze %358 : memref<1x!tpu.dma_semaphore, #tpu.memory_space<semaphore_mem>> -> memref<!tpu.dma_semaphore, #tpu.memory_space<semaphore_mem>>
      tpu.enqueue_dma source(%355 : memref<1x128xf32, #tpu.memory_space<any>>) target(%357 : memref<1x128xf32, #tpu.memory_space<vmem>>) target_semaphore(%359 : memref<!tpu.dma_semaphore, #tpu.memory_space<semaphore_mem>>)
      %360 = arith.index_cast %1 : i32 to index
      %c12_140 = arith.constant 12 : index
      %361 = memref.load %arg2[%360, %c12_140] : memref<1x16xi32, #tpu.memory_space<smem>>
      %c0_i32_141 = arith.constant 0 : i32
      %362 = tpu.memref_slice %arg9[%361, %c0_i32_141] : memref<128x128xf32, #tpu.memory_space<any>> -> memref<1x128xf32, #tpu.memory_space<any>>
      %c12_i32_142 = arith.constant 12 : i32
      %c0_i32_143 = arith.constant 0 : i32
      %363 = tpu.memref_slice %arg12[%11, %c12_i32_142, %c0_i32_143] : memref<2x16x128xf32, #tpu.memory_space<vmem>> -> memref<1x1x128xf32, #tpu.memory_space<vmem>>
      %364 = tpu.memref_squeeze %363 : memref<1x1x128xf32, #tpu.memory_space<vmem>> -> memref<1x128xf32, #tpu.memory_space<vmem>>
      %365 = tpu.memref_slice %arg13[%11] : memref<2x!tpu.dma_semaphore, #tpu.memory_space<semaphore_mem>> -> memref<1x!tpu.dma_semaphore, #tpu.memory_space<semaphore_mem>>
      %366 = tpu.memref_squeeze %365 : memref<1x!tpu.dma_semaphore, #tpu.memory_space<semaphore_mem>> -> memref<!tpu.dma_semaphore, #tpu.memory_space<semaphore_mem>>
      tpu.enqueue_dma source(%362 : memref<1x128xf32, #tpu.memory_space<any>>) target(%364 : memref<1x128xf32, #tpu.memory_space<vmem>>) target_semaphore(%366 : memref<!tpu.dma_semaphore, #tpu.memory_space<semaphore_mem>>)
      %367 = arith.index_cast %1 : i32 to index
      %c13_144 = arith.constant 13 : index
      %368 = memref.load %arg2[%367, %c13_144] : memref<1x16xi32, #tpu.memory_space<smem>>
      %c0_i32_145 = arith.constant 0 : i32
      %369 = tpu.memref_slice %arg9[%368, %c0_i32_145] : memref<128x128xf32, #tpu.memory_space<any>> -> memref<1x128xf32, #tpu.memory_space<any>>
      %c13_i32_146 = arith.constant 13 : i32
      %c0_i32_147 = arith.constant 0 : i32
      %370 = tpu.memref_slice %arg12[%11, %c13_i32_146, %c0_i32_147] : memref<2x16x128xf32, #tpu.memory_space<vmem>> -> memref<1x1x128xf32, #tpu.memory_space<vmem>>
      %371 = tpu.memref_squeeze %370 : memref<1x1x128xf32, #tpu.memory_space<vmem>> -> memref<1x128xf32, #tpu.memory_space<vmem>>
      %372 = tpu.memref_slice %arg13[%11] : memref<2x!tpu.dma_semaphore, #tpu.memory_space<semaphore_mem>> -> memref<1x!tpu.dma_semaphore, #tpu.memory_space<semaphore_mem>>
      %373 = tpu.memref_squeeze %372 : memref<1x!tpu.dma_semaphore, #tpu.memory_space<semaphore_mem>> -> memref<!tpu.dma_semaphore, #tpu.memory_space<semaphore_mem>>
      tpu.enqueue_dma source(%369 : memref<1x128xf32, #tpu.memory_space<any>>) target(%371 : memref<1x128xf32, #tpu.memory_space<vmem>>) target_semaphore(%373 : memref<!tpu.dma_semaphore, #tpu.memory_space<semaphore_mem>>)
      %374 = arith.index_cast %1 : i32 to index
      %c14_148 = arith.constant 14 : index
      %375 = memref.load %arg2[%374, %c14_148] : memref<1x16xi32, #tpu.memory_space<smem>>
      %c0_i32_149 = arith.constant 0 : i32
      %376 = tpu.memref_slice %arg9[%375, %c0_i32_149] : memref<128x128xf32, #tpu.memory_space<any>> -> memref<1x128xf32, #tpu.memory_space<any>>
      %c14_i32_150 = arith.constant 14 : i32
      %c0_i32_151 = arith.constant 0 : i32
      %377 = tpu.memref_slice %arg12[%11, %c14_i32_150, %c0_i32_151] : memref<2x16x128xf32, #tpu.memory_space<vmem>> -> memref<1x1x128xf32, #tpu.memory_space<vmem>>
      %378 = tpu.memref_squeeze %377 : memref<1x1x128xf32, #tpu.memory_space<vmem>> -> memref<1x128xf32, #tpu.memory_space<vmem>>
      %379 = tpu.memref_slice %arg13[%11] : memref<2x!tpu.dma_semaphore, #tpu.memory_space<semaphore_mem>> -> memref<1x!tpu.dma_semaphore, #tpu.memory_space<semaphore_mem>>
      %380 = tpu.memref_squeeze %379 : memref<1x!tpu.dma_semaphore, #tpu.memory_space<semaphore_mem>> -> memref<!tpu.dma_semaphore, #tpu.memory_space<semaphore_mem>>
      tpu.enqueue_dma source(%376 : memref<1x128xf32, #tpu.memory_space<any>>) target(%378 : memref<1x128xf32, #tpu.memory_space<vmem>>) target_semaphore(%380 : memref<!tpu.dma_semaphore, #tpu.memory_space<semaphore_mem>>)
      %381 = arith.index_cast %1 : i32 to index
      %c15_152 = arith.constant 15 : index
      %382 = memref.load %arg2[%381, %c15_152] : memref<1x16xi32, #tpu.memory_space<smem>>
      %c0_i32_153 = arith.constant 0 : i32
      %383 = tpu.memref_slice %arg9[%382, %c0_i32_153] : memref<128x128xf32, #tpu.memory_space<any>> -> memref<1x128xf32, #tpu.memory_space<any>>
      %c15_i32_154 = arith.constant 15 : i32
      %c0_i32_155 = arith.constant 0 : i32
      %384 = tpu.memref_slice %arg12[%11, %c15_i32_154, %c0_i32_155] : memref<2x16x128xf32, #tpu.memory_space<vmem>> -> memref<1x1x128xf32, #tpu.memory_space<vmem>>
      %385 = tpu.memref_squeeze %384 : memref<1x1x128xf32, #tpu.memory_space<vmem>> -> memref<1x128xf32, #tpu.memory_space<vmem>>
      %386 = tpu.memref_slice %arg13[%11] : memref<2x!tpu.dma_semaphore, #tpu.memory_space<semaphore_mem>> -> memref<1x!tpu.dma_semaphore, #tpu.memory_space<semaphore_mem>>
      %387 = tpu.memref_squeeze %386 : memref<1x!tpu.dma_semaphore, #tpu.memory_space<semaphore_mem>> -> memref<!tpu.dma_semaphore, #tpu.memory_space<semaphore_mem>>
      tpu.enqueue_dma source(%383 : memref<1x128xf32, #tpu.memory_space<any>>) target(%385 : memref<1x128xf32, #tpu.memory_space<vmem>>) target_semaphore(%387 : memref<!tpu.dma_semaphore, #tpu.memory_space<semaphore_mem>>)
    } else {
    }
    %15 = arith.index_cast %1 : i32 to index
    %c0 = arith.constant 0 : index
    %16 = memref.load %arg2[%15, %c0] : memref<1x16xi32, #tpu.memory_space<smem>>
    %c0_i32_6 = arith.constant 0 : i32
    %17 = tpu.memref_slice %arg9[%16, %c0_i32_6] : memref<128x128xf32, #tpu.memory_space<any>> -> memref<1x128xf32, #tpu.memory_space<any>>
    %c0_i32_7 = arith.constant 0 : i32
    %c0_i32_8 = arith.constant 0 : i32
    %18 = tpu.memref_slice %arg12[%11, %c0_i32_7, %c0_i32_8] : memref<2x16x128xf32, #tpu.memory_space<vmem>> -> memref<1x1x128xf32, #tpu.memory_space<vmem>>
    %19 = tpu.memref_squeeze %18 : memref<1x1x128xf32, #tpu.memory_space<vmem>> -> memref<1x128xf32, #tpu.memory_space<vmem>>
    %20 = tpu.memref_slice %arg13[%11] : memref<2x!tpu.dma_semaphore, #tpu.memory_space<semaphore_mem>> -> memref<1x!tpu.dma_semaphore, #tpu.memory_space<semaphore_mem>>
    %21 = tpu.memref_squeeze %20 : memref<1x!tpu.dma_semaphore, #tpu.memory_space<semaphore_mem>> -> memref<!tpu.dma_semaphore, #tpu.memory_space<semaphore_mem>>
    tpu.wait_dma2 semaphore(%21 : memref<!tpu.dma_semaphore, #tpu.memory_space<semaphore_mem>>) src(%17 : memref<1x128xf32, #tpu.memory_space<any>>) dst(%19 : memref<1x128xf32, #tpu.memory_space<vmem>>)
    %22 = arith.index_cast %1 : i32 to index
    %c1 = arith.constant 1 : index
    %23 = memref.load %arg2[%22, %c1] : memref<1x16xi32, #tpu.memory_space<smem>>
    %c0_i32_9 = arith.constant 0 : i32
    %24 = tpu.memref_slice %arg9[%23, %c0_i32_9] : memref<128x128xf32, #tpu.memory_space<any>> -> memref<1x128xf32, #tpu.memory_space<any>>
    %c1_i32_10 = arith.constant 1 : i32
    %c0_i32_11 = arith.constant 0 : i32
    %25 = tpu.memref_slice %arg12[%11, %c1_i32_10, %c0_i32_11] : memref<2x16x128xf32, #tpu.memory_space<vmem>> -> memref<1x1x128xf32, #tpu.memory_space<vmem>>
    %26 = tpu.memref_squeeze %25 : memref<1x1x128xf32, #tpu.memory_space<vmem>> -> memref<1x128xf32, #tpu.memory_space<vmem>>
    %27 = tpu.memref_slice %arg13[%11] : memref<2x!tpu.dma_semaphore, #tpu.memory_space<semaphore_mem>> -> memref<1x!tpu.dma_semaphore, #tpu.memory_space<semaphore_mem>>
    %28 = tpu.memref_squeeze %27 : memref<1x!tpu.dma_semaphore, #tpu.memory_space<semaphore_mem>> -> memref<!tpu.dma_semaphore, #tpu.memory_space<semaphore_mem>>
    tpu.wait_dma2 semaphore(%28 : memref<!tpu.dma_semaphore, #tpu.memory_space<semaphore_mem>>) src(%24 : memref<1x128xf32, #tpu.memory_space<any>>) dst(%26 : memref<1x128xf32, #tpu.memory_space<vmem>>)
    %29 = arith.index_cast %1 : i32 to index
    %c2 = arith.constant 2 : index
    %30 = memref.load %arg2[%29, %c2] : memref<1x16xi32, #tpu.memory_space<smem>>
    %c0_i32_12 = arith.constant 0 : i32
    %31 = tpu.memref_slice %arg9[%30, %c0_i32_12] : memref<128x128xf32, #tpu.memory_space<any>> -> memref<1x128xf32, #tpu.memory_space<any>>
    %c2_i32_13 = arith.constant 2 : i32
    %c0_i32_14 = arith.constant 0 : i32
    %32 = tpu.memref_slice %arg12[%11, %c2_i32_13, %c0_i32_14] : memref<2x16x128xf32, #tpu.memory_space<vmem>> -> memref<1x1x128xf32, #tpu.memory_space<vmem>>
    %33 = tpu.memref_squeeze %32 : memref<1x1x128xf32, #tpu.memory_space<vmem>> -> memref<1x128xf32, #tpu.memory_space<vmem>>
    %34 = tpu.memref_slice %arg13[%11] : memref<2x!tpu.dma_semaphore, #tpu.memory_space<semaphore_mem>> -> memref<1x!tpu.dma_semaphore, #tpu.memory_space<semaphore_mem>>
    %35 = tpu.memref_squeeze %34 : memref<1x!tpu.dma_semaphore, #tpu.memory_space<semaphore_mem>> -> memref<!tpu.dma_semaphore, #tpu.memory_space<semaphore_mem>>
    tpu.wait_dma2 semaphore(%35 : memref<!tpu.dma_semaphore, #tpu.memory_space<semaphore_mem>>) src(%31 : memref<1x128xf32, #tpu.memory_space<any>>) dst(%33 : memref<1x128xf32, #tpu.memory_space<vmem>>)
    %36 = arith.index_cast %1 : i32 to index
    %c3 = arith.constant 3 : index
    %37 = memref.load %arg2[%36, %c3] : memref<1x16xi32, #tpu.memory_space<smem>>
    %c0_i32_15 = arith.constant 0 : i32
    %38 = tpu.memref_slice %arg9[%37, %c0_i32_15] : memref<128x128xf32, #tpu.memory_space<any>> -> memref<1x128xf32, #tpu.memory_space<any>>
    %c3_i32 = arith.constant 3 : i32
    %c0_i32_16 = arith.constant 0 : i32
    %39 = tpu.memref_slice %arg12[%11, %c3_i32, %c0_i32_16] : memref<2x16x128xf32, #tpu.memory_space<vmem>> -> memref<1x1x128xf32, #tpu.memory_space<vmem>>
    %40 = tpu.memref_squeeze %39 : memref<1x1x128xf32, #tpu.memory_space<vmem>> -> memref<1x128xf32, #tpu.memory_space<vmem>>
    %41 = tpu.memref_slice %arg13[%11] : memref<2x!tpu.dma_semaphore, #tpu.memory_space<semaphore_mem>> -> memref<1x!tpu.dma_semaphore, #tpu.memory_space<semaphore_mem>>
    %42 = tpu.memref_squeeze %41 : memref<1x!tpu.dma_semaphore, #tpu.memory_space<semaphore_mem>> -> memref<!tpu.dma_semaphore, #tpu.memory_space<semaphore_mem>>
    tpu.wait_dma2 semaphore(%42 : memref<!tpu.dma_semaphore, #tpu.memory_space<semaphore_mem>>) src(%38 : memref<1x128xf32, #tpu.memory_space<any>>) dst(%40 : memref<1x128xf32, #tpu.memory_space<vmem>>)
    %43 = arith.index_cast %1 : i32 to index
    %c4 = arith.constant 4 : index
    %44 = memref.load %arg2[%43, %c4] : memref<1x16xi32, #tpu.memory_space<smem>>
    %c0_i32_17 = arith.constant 0 : i32
    %45 = tpu.memref_slice %arg9[%44, %c0_i32_17] : memref<128x128xf32, #tpu.memory_space<any>> -> memref<1x128xf32, #tpu.memory_space<any>>
    %c4_i32 = arith.constant 4 : i32
    %c0_i32_18 = arith.constant 0 : i32
    %46 = tpu.memref_slice %arg12[%11, %c4_i32, %c0_i32_18] : memref<2x16x128xf32, #tpu.memory_space<vmem>> -> memref<1x1x128xf32, #tpu.memory_space<vmem>>
    %47 = tpu.memref_squeeze %46 : memref<1x1x128xf32, #tpu.memory_space<vmem>> -> memref<1x128xf32, #tpu.memory_space<vmem>>
    %48 = tpu.memref_slice %arg13[%11] : memref<2x!tpu.dma_semaphore, #tpu.memory_space<semaphore_mem>> -> memref<1x!tpu.dma_semaphore, #tpu.memory_space<semaphore_mem>>
    %49 = tpu.memref_squeeze %48 : memref<1x!tpu.dma_semaphore, #tpu.memory_space<semaphore_mem>> -> memref<!tpu.dma_semaphore, #tpu.memory_space<semaphore_mem>>
    tpu.wait_dma2 semaphore(%49 : memref<!tpu.dma_semaphore, #tpu.memory_space<semaphore_mem>>) src(%45 : memref<1x128xf32, #tpu.memory_space<any>>) dst(%47 : memref<1x128xf32, #tpu.memory_space<vmem>>)
    %50 = arith.index_cast %1 : i32 to index
    %c5 = arith.constant 5 : index
    %51 = memref.load %arg2[%50, %c5] : memref<1x16xi32, #tpu.memory_space<smem>>
    %c0_i32_19 = arith.constant 0 : i32
    %52 = tpu.memref_slice %arg9[%51, %c0_i32_19] : memref<128x128xf32, #tpu.memory_space<any>> -> memref<1x128xf32, #tpu.memory_space<any>>
    %c5_i32 = arith.constant 5 : i32
    %c0_i32_20 = arith.constant 0 : i32
    %53 = tpu.memref_slice %arg12[%11, %c5_i32, %c0_i32_20] : memref<2x16x128xf32, #tpu.memory_space<vmem>> -> memref<1x1x128xf32, #tpu.memory_space<vmem>>
    %54 = tpu.memref_squeeze %53 : memref<1x1x128xf32, #tpu.memory_space<vmem>> -> memref<1x128xf32, #tpu.memory_space<vmem>>
    %55 = tpu.memref_slice %arg13[%11] : memref<2x!tpu.dma_semaphore, #tpu.memory_space<semaphore_mem>> -> memref<1x!tpu.dma_semaphore, #tpu.memory_space<semaphore_mem>>
    %56 = tpu.memref_squeeze %55 : memref<1x!tpu.dma_semaphore, #tpu.memory_space<semaphore_mem>> -> memref<!tpu.dma_semaphore, #tpu.memory_space<semaphore_mem>>
    tpu.wait_dma2 semaphore(%56 : memref<!tpu.dma_semaphore, #tpu.memory_space<semaphore_mem>>) src(%52 : memref<1x128xf32, #tpu.memory_space<any>>) dst(%54 : memref<1x128xf32, #tpu.memory_space<vmem>>)
    %57 = arith.index_cast %1 : i32 to index
    %c6 = arith.constant 6 : index
    %58 = memref.load %arg2[%57, %c6] : memref<1x16xi32, #tpu.memory_space<smem>>
    %c0_i32_21 = arith.constant 0 : i32
    %59 = tpu.memref_slice %arg9[%58, %c0_i32_21] : memref<128x128xf32, #tpu.memory_space<any>> -> memref<1x128xf32, #tpu.memory_space<any>>
    %c6_i32 = arith.constant 6 : i32
    %c0_i32_22 = arith.constant 0 : i32
    %60 = tpu.memref_slice %arg12[%11, %c6_i32, %c0_i32_22] : memref<2x16x128xf32, #tpu.memory_space<vmem>> -> memref<1x1x128xf32, #tpu.memory_space<vmem>>
    %61 = tpu.memref_squeeze %60 : memref<1x1x128xf32, #tpu.memory_space<vmem>> -> memref<1x128xf32, #tpu.memory_space<vmem>>
    %62 = tpu.memref_slice %arg13[%11] : memref<2x!tpu.dma_semaphore, #tpu.memory_space<semaphore_mem>> -> memref<1x!tpu.dma_semaphore, #tpu.memory_space<semaphore_mem>>
    %63 = tpu.memref_squeeze %62 : memref<1x!tpu.dma_semaphore, #tpu.memory_space<semaphore_mem>> -> memref<!tpu.dma_semaphore, #tpu.memory_space<semaphore_mem>>
    tpu.wait_dma2 semaphore(%63 : memref<!tpu.dma_semaphore, #tpu.memory_space<semaphore_mem>>) src(%59 : memref<1x128xf32, #tpu.memory_space<any>>) dst(%61 : memref<1x128xf32, #tpu.memory_space<vmem>>)
    %64 = arith.index_cast %1 : i32 to index
    %c7 = arith.constant 7 : index
    %65 = memref.load %arg2[%64, %c7] : memref<1x16xi32, #tpu.memory_space<smem>>
    %c0_i32_23 = arith.constant 0 : i32
    %66 = tpu.memref_slice %arg9[%65, %c0_i32_23] : memref<128x128xf32, #tpu.memory_space<any>> -> memref<1x128xf32, #tpu.memory_space<any>>
    %c7_i32 = arith.constant 7 : i32
    %c0_i32_24 = arith.constant 0 : i32
    %67 = tpu.memref_slice %arg12[%11, %c7_i32, %c0_i32_24] : memref<2x16x128xf32, #tpu.memory_space<vmem>> -> memref<1x1x128xf32, #tpu.memory_space<vmem>>
    %68 = tpu.memref_squeeze %67 : memref<1x1x128xf32, #tpu.memory_space<vmem>> -> memref<1x128xf32, #tpu.memory_space<vmem>>
    %69 = tpu.memref_slice %arg13[%11] : memref<2x!tpu.dma_semaphore, #tpu.memory_space<semaphore_mem>> -> memref<1x!tpu.dma_semaphore, #tpu.memory_space<semaphore_mem>>
    %70 = tpu.memref_squeeze %69 : memref<1x!tpu.dma_semaphore, #tpu.memory_space<semaphore_mem>> -> memref<!tpu.dma_semaphore, #tpu.memory_space<semaphore_mem>>
    tpu.wait_dma2 semaphore(%70 : memref<!tpu.dma_semaphore, #tpu.memory_space<semaphore_mem>>) src(%66 : memref<1x128xf32, #tpu.memory_space<any>>) dst(%68 : memref<1x128xf32, #tpu.memory_space<vmem>>)
    %71 = arith.index_cast %1 : i32 to index
    %c8 = arith.constant 8 : index
    %72 = memref.load %arg2[%71, %c8] : memref<1x16xi32, #tpu.memory_space<smem>>
    %c0_i32_25 = arith.constant 0 : i32
    %73 = tpu.memref_slice %arg9[%72, %c0_i32_25] : memref<128x128xf32, #tpu.memory_space<any>> -> memref<1x128xf32, #tpu.memory_space<any>>
    %c8_i32 = arith.constant 8 : i32
    %c0_i32_26 = arith.constant 0 : i32
    %74 = tpu.memref_slice %arg12[%11, %c8_i32, %c0_i32_26] : memref<2x16x128xf32, #tpu.memory_space<vmem>> -> memref<1x1x128xf32, #tpu.memory_space<vmem>>
    %75 = tpu.memref_squeeze %74 : memref<1x1x128xf32, #tpu.memory_space<vmem>> -> memref<1x128xf32, #tpu.memory_space<vmem>>
    %76 = tpu.memref_slice %arg13[%11] : memref<2x!tpu.dma_semaphore, #tpu.memory_space<semaphore_mem>> -> memref<1x!tpu.dma_semaphore, #tpu.memory_space<semaphore_mem>>
    %77 = tpu.memref_squeeze %76 : memref<1x!tpu.dma_semaphore, #tpu.memory_space<semaphore_mem>> -> memref<!tpu.dma_semaphore, #tpu.memory_space<semaphore_mem>>
    tpu.wait_dma2 semaphore(%77 : memref<!tpu.dma_semaphore, #tpu.memory_space<semaphore_mem>>) src(%73 : memref<1x128xf32, #tpu.memory_space<any>>) dst(%75 : memref<1x128xf32, #tpu.memory_space<vmem>>)
    %78 = arith.index_cast %1 : i32 to index
    %c9 = arith.constant 9 : index
    %79 = memref.load %arg2[%78, %c9] : memref<1x16xi32, #tpu.memory_space<smem>>
    %c0_i32_27 = arith.constant 0 : i32
    %80 = tpu.memref_slice %arg9[%79, %c0_i32_27] : memref<128x128xf32, #tpu.memory_space<any>> -> memref<1x128xf32, #tpu.memory_space<any>>
    %c9_i32 = arith.constant 9 : i32
    %c0_i32_28 = arith.constant 0 : i32
    %81 = tpu.memref_slice %arg12[%11, %c9_i32, %c0_i32_28] : memref<2x16x128xf32, #tpu.memory_space<vmem>> -> memref<1x1x128xf32, #tpu.memory_space<vmem>>
    %82 = tpu.memref_squeeze %81 : memref<1x1x128xf32, #tpu.memory_space<vmem>> -> memref<1x128xf32, #tpu.memory_space<vmem>>
    %83 = tpu.memref_slice %arg13[%11] : memref<2x!tpu.dma_semaphore, #tpu.memory_space<semaphore_mem>> -> memref<1x!tpu.dma_semaphore, #tpu.memory_space<semaphore_mem>>
    %84 = tpu.memref_squeeze %83 : memref<1x!tpu.dma_semaphore, #tpu.memory_space<semaphore_mem>> -> memref<!tpu.dma_semaphore, #tpu.memory_space<semaphore_mem>>
    tpu.wait_dma2 semaphore(%84 : memref<!tpu.dma_semaphore, #tpu.memory_space<semaphore_mem>>) src(%80 : memref<1x128xf32, #tpu.memory_space<any>>) dst(%82 : memref<1x128xf32, #tpu.memory_space<vmem>>)
    %85 = arith.index_cast %1 : i32 to index
    %c10 = arith.constant 10 : index
    %86 = memref.load %arg2[%85, %c10] : memref<1x16xi32, #tpu.memory_space<smem>>
    %c0_i32_29 = arith.constant 0 : i32
    %87 = tpu.memref_slice %arg9[%86, %c0_i32_29] : memref<128x128xf32, #tpu.memory_space<any>> -> memref<1x128xf32, #tpu.memory_space<any>>
    %c10_i32 = arith.constant 10 : i32
    %c0_i32_30 = arith.constant 0 : i32
    %88 = tpu.memref_slice %arg12[%11, %c10_i32, %c0_i32_30] : memref<2x16x128xf32, #tpu.memory_space<vmem>> -> memref<1x1x128xf32, #tpu.memory_space<vmem>>
    %89 = tpu.memref_squeeze %88 : memref<1x1x128xf32, #tpu.memory_space<vmem>> -> memref<1x128xf32, #tpu.memory_space<vmem>>
    %90 = tpu.memref_slice %arg13[%11] : memref<2x!tpu.dma_semaphore, #tpu.memory_space<semaphore_mem>> -> memref<1x!tpu.dma_semaphore, #tpu.memory_space<semaphore_mem>>
    %91 = tpu.memref_squeeze %90 : memref<1x!tpu.dma_semaphore, #tpu.memory_space<semaphore_mem>> -> memref<!tpu.dma_semaphore, #tpu.memory_space<semaphore_mem>>
    tpu.wait_dma2 semaphore(%91 : memref<!tpu.dma_semaphore, #tpu.memory_space<semaphore_mem>>) src(%87 : memref<1x128xf32, #tpu.memory_space<any>>) dst(%89 : memref<1x128xf32, #tpu.memory_space<vmem>>)
    %92 = arith.index_cast %1 : i32 to index
    %c11 = arith.constant 11 : index
    %93 = memref.load %arg2[%92, %c11] : memref<1x16xi32, #tpu.memory_space<smem>>
    %c0_i32_31 = arith.constant 0 : i32
    %94 = tpu.memref_slice %arg9[%93, %c0_i32_31] : memref<128x128xf32, #tpu.memory_space<any>> -> memref<1x128xf32, #tpu.memory_space<any>>
    %c11_i32 = arith.constant 11 : i32
    %c0_i32_32 = arith.constant 0 : i32
    %95 = tpu.memref_slice %arg12[%11, %c11_i32, %c0_i32_32] : memref<2x16x128xf32, #tpu.memory_space<vmem>> -> memref<1x1x128xf32, #tpu.memory_space<vmem>>
    %96 = tpu.memref_squeeze %95 : memref<1x1x128xf32, #tpu.memory_space<vmem>> -> memref<1x128xf32, #tpu.memory_space<vmem>>
    %97 = tpu.memref_slice %arg13[%11] : memref<2x!tpu.dma_semaphore, #tpu.memory_space<semaphore_mem>> -> memref<1x!tpu.dma_semaphore, #tpu.memory_space<semaphore_mem>>
    %98 = tpu.memref_squeeze %97 : memref<1x!tpu.dma_semaphore, #tpu.memory_space<semaphore_mem>> -> memref<!tpu.dma_semaphore, #tpu.memory_space<semaphore_mem>>
    tpu.wait_dma2 semaphore(%98 : memref<!tpu.dma_semaphore, #tpu.memory_space<semaphore_mem>>) src(%94 : memref<1x128xf32, #tpu.memory_space<any>>) dst(%96 : memref<1x128xf32, #tpu.memory_space<vmem>>)
    %99 = arith.index_cast %1 : i32 to index
    %c12 = arith.constant 12 : index
    %100 = memref.load %arg2[%99, %c12] : memref<1x16xi32, #tpu.memory_space<smem>>
    %c0_i32_33 = arith.constant 0 : i32
    %101 = tpu.memref_slice %arg9[%100, %c0_i32_33] : memref<128x128xf32, #tpu.memory_space<any>> -> memref<1x128xf32, #tpu.memory_space<any>>
    %c12_i32 = arith.constant 12 : i32
    %c0_i32_34 = arith.constant 0 : i32
    %102 = tpu.memref_slice %arg12[%11, %c12_i32, %c0_i32_34] : memref<2x16x128xf32, #tpu.memory_space<vmem>> -> memref<1x1x128xf32, #tpu.memory_space<vmem>>
    %103 = tpu.memref_squeeze %102 : memref<1x1x128xf32, #tpu.memory_space<vmem>> -> memref<1x128xf32, #tpu.memory_space<vmem>>
    %104 = tpu.memref_slice %arg13[%11] : memref<2x!tpu.dma_semaphore, #tpu.memory_space<semaphore_mem>> -> memref<1x!tpu.dma_semaphore, #tpu.memory_space<semaphore_mem>>
    %105 = tpu.memref_squeeze %104 : memref<1x!tpu.dma_semaphore, #tpu.memory_space<semaphore_mem>> -> memref<!tpu.dma_semaphore, #tpu.memory_space<semaphore_mem>>
    tpu.wait_dma2 semaphore(%105 : memref<!tpu.dma_semaphore, #tpu.memory_space<semaphore_mem>>) src(%101 : memref<1x128xf32, #tpu.memory_space<any>>) dst(%103 : memref<1x128xf32, #tpu.memory_space<vmem>>)
    %106 = arith.index_cast %1 : i32 to index
    %c13 = arith.constant 13 : index
    %107 = memref.load %arg2[%106, %c13] : memref<1x16xi32, #tpu.memory_space<smem>>
    %c0_i32_35 = arith.constant 0 : i32
    %108 = tpu.memref_slice %arg9[%107, %c0_i32_35] : memref<128x128xf32, #tpu.memory_space<any>> -> memref<1x128xf32, #tpu.memory_space<any>>
    %c13_i32 = arith.constant 13 : i32
    %c0_i32_36 = arith.constant 0 : i32
    %109 = tpu.memref_slice %arg12[%11, %c13_i32, %c0_i32_36] : memref<2x16x128xf32, #tpu.memory_space<vmem>> -> memref<1x1x128xf32, #tpu.memory_space<vmem>>
    %110 = tpu.memref_squeeze %109 : memref<1x1x128xf32, #tpu.memory_space<vmem>> -> memref<1x128xf32, #tpu.memory_space<vmem>>
    %111 = tpu.memref_slice %arg13[%11] : memref<2x!tpu.dma_semaphore, #tpu.memory_space<semaphore_mem>> -> memref<1x!tpu.dma_semaphore, #tpu.memory_space<semaphore_mem>>
    %112 = tpu.memref_squeeze %111 : memref<1x!tpu.dma_semaphore, #tpu.memory_space<semaphore_mem>> -> memref<!tpu.dma_semaphore, #tpu.memory_space<semaphore_mem>>
    tpu.wait_dma2 semaphore(%112 : memref<!tpu.dma_semaphore, #tpu.memory_space<semaphore_mem>>) src(%108 : memref<1x128xf32, #tpu.memory_space<any>>) dst(%110 : memref<1x128xf32, #tpu.memory_space<vmem>>)
    %113 = arith.index_cast %1 : i32 to index
    %c14 = arith.constant 14 : index
    %114 = memref.load %arg2[%113, %c14] : memref<1x16xi32, #tpu.memory_space<smem>>
    %c0_i32_37 = arith.constant 0 : i32
    %115 = tpu.memref_slice %arg9[%114, %c0_i32_37] : memref<128x128xf32, #tpu.memory_space<any>> -> memref<1x128xf32, #tpu.memory_space<any>>
    %c14_i32 = arith.constant 14 : i32
    %c0_i32_38 = arith.constant 0 : i32
    %116 = tpu.memref_slice %arg12[%11, %c14_i32, %c0_i32_38] : memref<2x16x128xf32, #tpu.memory_space<vmem>> -> memref<1x1x128xf32, #tpu.memory_space<vmem>>
    %117 = tpu.memref_squeeze %116 : memref<1x1x128xf32, #tpu.memory_space<vmem>> -> memref<1x128xf32, #tpu.memory_space<vmem>>
    %118 = tpu.memref_slice %arg13[%11] : memref<2x!tpu.dma_semaphore, #tpu.memory_space<semaphore_mem>> -> memref<1x!tpu.dma_semaphore, #tpu.memory_space<semaphore_mem>>
    %119 = tpu.memref_squeeze %118 : memref<1x!tpu.dma_semaphore, #tpu.memory_space<semaphore_mem>> -> memref<!tpu.dma_semaphore, #tpu.memory_space<semaphore_mem>>
    tpu.wait_dma2 semaphore(%119 : memref<!tpu.dma_semaphore, #tpu.memory_space<semaphore_mem>>) src(%115 : memref<1x128xf32, #tpu.memory_space<any>>) dst(%117 : memref<1x128xf32, #tpu.memory_space<vmem>>)
    %120 = arith.index_cast %1 : i32 to index
    %c15 = arith.constant 15 : index
    %121 = memref.load %arg2[%120, %c15] : memref<1x16xi32, #tpu.memory_space<smem>>
    %c0_i32_39 = arith.constant 0 : i32
    %122 = tpu.memref_slice %arg9[%121, %c0_i32_39] : memref<128x128xf32, #tpu.memory_space<any>> -> memref<1x128xf32, #tpu.memory_space<any>>
    %c15_i32 = arith.constant 15 : i32
    %c0_i32_40 = arith.constant 0 : i32
    %123 = tpu.memref_slice %arg12[%11, %c15_i32, %c0_i32_40] : memref<2x16x128xf32, #tpu.memory_space<vmem>> -> memref<1x1x128xf32, #tpu.memory_space<vmem>>
    %124 = tpu.memref_squeeze %123 : memref<1x1x128xf32, #tpu.memory_space<vmem>> -> memref<1x128xf32, #tpu.memory_space<vmem>>
    %125 = tpu.memref_slice %arg13[%11] : memref<2x!tpu.dma_semaphore, #tpu.memory_space<semaphore_mem>> -> memref<1x!tpu.dma_semaphore, #tpu.memory_space<semaphore_mem>>
    %126 = tpu.memref_squeeze %125 : memref<1x!tpu.dma_semaphore, #tpu.memory_space<semaphore_mem>> -> memref<!tpu.dma_semaphore, #tpu.memory_space<semaphore_mem>>
    tpu.wait_dma2 semaphore(%126 : memref<!tpu.dma_semaphore, #tpu.memory_space<semaphore_mem>>) src(%122 : memref<1x128xf32, #tpu.memory_space<any>>) dst(%124 : memref<1x128xf32, #tpu.memory_space<vmem>>)
    %c1_i32_41 = arith.constant 1 : i32
    %127 = arith.addi %arg1, %c1_i32_41 : i32
    %c1_i32_42 = arith.constant 1 : i32
    %128 = arith.cmpi slt, %127, %c1_i32_42 : i32
    %129 = arith.extui %128 : i1 to i32
    %c0_i32_43 = arith.constant 0 : i32
    %130 = arith.cmpi ne, %129, %c0_i32_43 : i32
    scf.if %130 {
      %c1_i32_92 = arith.constant 1 : i32
      %276 = arith.addi %1, %c1_i32_92 : i32
      %c1_i32_93 = arith.constant 1 : i32
      %277 = arith.subi %c1_i32_93, %11 : i32
      %278 = arith.index_cast %276 : i32 to index
      %c0_94 = arith.constant 0 : index
      %279 = memref.load %arg2[%278, %c0_94] : memref<1x16xi32, #tpu.memory_space<smem>>
      %c0_i32_95 = arith.constant 0 : i32
      %280 = tpu.memref_slice %arg9[%279, %c0_i32_95] : memref<128x128xf32, #tpu.memory_space<any>> -> memref<1x128xf32, #tpu.memory_space<any>>
      %c0_i32_96 = arith.constant 0 : i32
      %c0_i32_97 = arith.constant 0 : i32
      %281 = tpu.memref_slice %arg12[%277, %c0_i32_96, %c0_i32_97] : memref<2x16x128xf32, #tpu.memory_space<vmem>> -> memref<1x1x128xf32, #tpu.memory_space<vmem>>
      %282 = tpu.memref_squeeze %281 : memref<1x1x128xf32, #tpu.memory_space<vmem>> -> memref<1x128xf32, #tpu.memory_space<vmem>>
      %283 = tpu.memref_slice %arg13[%277] : memref<2x!tpu.dma_semaphore, #tpu.memory_space<semaphore_mem>> -> memref<1x!tpu.dma_semaphore, #tpu.memory_space<semaphore_mem>>
      %284 = tpu.memref_squeeze %283 : memref<1x!tpu.dma_semaphore, #tpu.memory_space<semaphore_mem>> -> memref<!tpu.dma_semaphore, #tpu.memory_space<semaphore_mem>>
      tpu.enqueue_dma source(%280 : memref<1x128xf32, #tpu.memory_space<any>>) target(%282 : memref<1x128xf32, #tpu.memory_space<vmem>>) target_semaphore(%284 : memref<!tpu.dma_semaphore, #tpu.memory_space<semaphore_mem>>)
      %285 = arith.index_cast %276 : i32 to index
      %c1_98 = arith.constant 1 : index
      %286 = memref.load %arg2[%285, %c1_98] : memref<1x16xi32, #tpu.memory_space<smem>>
      %c0_i32_99 = arith.constant 0 : i32
      %287 = tpu.memref_slice %arg9[%286, %c0_i32_99] : memref<128x128xf32, #tpu.memory_space<any>> -> memref<1x128xf32, #tpu.memory_space<any>>
      %c1_i32_100 = arith.constant 1 : i32
      %c0_i32_101 = arith.constant 0 : i32
      %288 = tpu.memref_slice %arg12[%277, %c1_i32_100, %c0_i32_101] : memref<2x16x128xf32, #tpu.memory_space<vmem>> -> memref<1x1x128xf32, #tpu.memory_space<vmem>>
      %289 = tpu.memref_squeeze %288 : memref<1x1x128xf32, #tpu.memory_space<vmem>> -> memref<1x128xf32, #tpu.memory_space<vmem>>
      %290 = tpu.memref_slice %arg13[%277] : memref<2x!tpu.dma_semaphore, #tpu.memory_space<semaphore_mem>> -> memref<1x!tpu.dma_semaphore, #tpu.memory_space<semaphore_mem>>
      %291 = tpu.memref_squeeze %290 : memref<1x!tpu.dma_semaphore, #tpu.memory_space<semaphore_mem>> -> memref<!tpu.dma_semaphore, #tpu.memory_space<semaphore_mem>>
      tpu.enqueue_dma source(%287 : memref<1x128xf32, #tpu.memory_space<any>>) target(%289 : memref<1x128xf32, #tpu.memory_space<vmem>>) target_semaphore(%291 : memref<!tpu.dma_semaphore, #tpu.memory_space<semaphore_mem>>)
      %292 = arith.index_cast %276 : i32 to index
      %c2_102 = arith.constant 2 : index
      %293 = memref.load %arg2[%292, %c2_102] : memref<1x16xi32, #tpu.memory_space<smem>>
      %c0_i32_103 = arith.constant 0 : i32
      %294 = tpu.memref_slice %arg9[%293, %c0_i32_103] : memref<128x128xf32, #tpu.memory_space<any>> -> memref<1x128xf32, #tpu.memory_space<any>>
      %c2_i32_104 = arith.constant 2 : i32
      %c0_i32_105 = arith.constant 0 : i32
      %295 = tpu.memref_slice %arg12[%277, %c2_i32_104, %c0_i32_105] : memref<2x16x128xf32, #tpu.memory_space<vmem>> -> memref<1x1x128xf32, #tpu.memory_space<vmem>>
      %296 = tpu.memref_squeeze %295 : memref<1x1x128xf32, #tpu.memory_space<vmem>> -> memref<1x128xf32, #tpu.memory_space<vmem>>
      %297 = tpu.memref_slice %arg13[%277] : memref<2x!tpu.dma_semaphore, #tpu.memory_space<semaphore_mem>> -> memref<1x!tpu.dma_semaphore, #tpu.memory_space<semaphore_mem>>
      %298 = tpu.memref_squeeze %297 : memref<1x!tpu.dma_semaphore, #tpu.memory_space<semaphore_mem>> -> memref<!tpu.dma_semaphore, #tpu.memory_space<semaphore_mem>>
      tpu.enqueue_dma source(%294 : memref<1x128xf32, #tpu.memory_space<any>>) target(%296 : memref<1x128xf32, #tpu.memory_space<vmem>>) target_semaphore(%298 : memref<!tpu.dma_semaphore, #tpu.memory_space<semaphore_mem>>)
      %299 = arith.index_cast %276 : i32 to index
      %c3_106 = arith.constant 3 : index
      %300 = memref.load %arg2[%299, %c3_106] : memref<1x16xi32, #tpu.memory_space<smem>>
      %c0_i32_107 = arith.constant 0 : i32
      %301 = tpu.memref_slice %arg9[%300, %c0_i32_107] : memref<128x128xf32, #tpu.memory_space<any>> -> memref<1x128xf32, #tpu.memory_space<any>>
      %c3_i32_108 = arith.constant 3 : i32
      %c0_i32_109 = arith.constant 0 : i32
      %302 = tpu.memref_slice %arg12[%277, %c3_i32_108, %c0_i32_109] : memref<2x16x128xf32, #tpu.memory_space<vmem>> -> memref<1x1x128xf32, #tpu.memory_space<vmem>>
      %303 = tpu.memref_squeeze %302 : memref<1x1x128xf32, #tpu.memory_space<vmem>> -> memref<1x128xf32, #tpu.memory_space<vmem>>
      %304 = tpu.memref_slice %arg13[%277] : memref<2x!tpu.dma_semaphore, #tpu.memory_space<semaphore_mem>> -> memref<1x!tpu.dma_semaphore, #tpu.memory_space<semaphore_mem>>
      %305 = tpu.memref_squeeze %304 : memref<1x!tpu.dma_semaphore, #tpu.memory_space<semaphore_mem>> -> memref<!tpu.dma_semaphore, #tpu.memory_space<semaphore_mem>>
      tpu.enqueue_dma source(%301 : memref<1x128xf32, #tpu.memory_space<any>>) target(%303 : memref<1x128xf32, #tpu.memory_space<vmem>>) target_semaphore(%305 : memref<!tpu.dma_semaphore, #tpu.memory_space<semaphore_mem>>)
      %306 = arith.index_cast %276 : i32 to index
      %c4_110 = arith.constant 4 : index
      %307 = memref.load %arg2[%306, %c4_110] : memref<1x16xi32, #tpu.memory_space<smem>>
      %c0_i32_111 = arith.constant 0 : i32
      %308 = tpu.memref_slice %arg9[%307, %c0_i32_111] : memref<128x128xf32, #tpu.memory_space<any>> -> memref<1x128xf32, #tpu.memory_space<any>>
      %c4_i32_112 = arith.constant 4 : i32
      %c0_i32_113 = arith.constant 0 : i32
      %309 = tpu.memref_slice %arg12[%277, %c4_i32_112, %c0_i32_113] : memref<2x16x128xf32, #tpu.memory_space<vmem>> -> memref<1x1x128xf32, #tpu.memory_space<vmem>>
      %310 = tpu.memref_squeeze %309 : memref<1x1x128xf32, #tpu.memory_space<vmem>> -> memref<1x128xf32, #tpu.memory_space<vmem>>
      %311 = tpu.memref_slice %arg13[%277] : memref<2x!tpu.dma_semaphore, #tpu.memory_space<semaphore_mem>> -> memref<1x!tpu.dma_semaphore, #tpu.memory_space<semaphore_mem>>
      %312 = tpu.memref_squeeze %311 : memref<1x!tpu.dma_semaphore, #tpu.memory_space<semaphore_mem>> -> memref<!tpu.dma_semaphore, #tpu.memory_space<semaphore_mem>>
      tpu.enqueue_dma source(%308 : memref<1x128xf32, #tpu.memory_space<any>>) target(%310 : memref<1x128xf32, #tpu.memory_space<vmem>>) target_semaphore(%312 : memref<!tpu.dma_semaphore, #tpu.memory_space<semaphore_mem>>)
      %313 = arith.index_cast %276 : i32 to index
      %c5_114 = arith.constant 5 : index
      %314 = memref.load %arg2[%313, %c5_114] : memref<1x16xi32, #tpu.memory_space<smem>>
      %c0_i32_115 = arith.constant 0 : i32
      %315 = tpu.memref_slice %arg9[%314, %c0_i32_115] : memref<128x128xf32, #tpu.memory_space<any>> -> memref<1x128xf32, #tpu.memory_space<any>>
      %c5_i32_116 = arith.constant 5 : i32
      %c0_i32_117 = arith.constant 0 : i32
      %316 = tpu.memref_slice %arg12[%277, %c5_i32_116, %c0_i32_117] : memref<2x16x128xf32, #tpu.memory_space<vmem>> -> memref<1x1x128xf32, #tpu.memory_space<vmem>>
      %317 = tpu.memref_squeeze %316 : memref<1x1x128xf32, #tpu.memory_space<vmem>> -> memref<1x128xf32, #tpu.memory_space<vmem>>
      %318 = tpu.memref_slice %arg13[%277] : memref<2x!tpu.dma_semaphore, #tpu.memory_space<semaphore_mem>> -> memref<1x!tpu.dma_semaphore, #tpu.memory_space<semaphore_mem>>
      %319 = tpu.memref_squeeze %318 : memref<1x!tpu.dma_semaphore, #tpu.memory_space<semaphore_mem>> -> memref<!tpu.dma_semaphore, #tpu.memory_space<semaphore_mem>>
      tpu.enqueue_dma source(%315 : memref<1x128xf32, #tpu.memory_space<any>>) target(%317 : memref<1x128xf32, #tpu.memory_space<vmem>>) target_semaphore(%319 : memref<!tpu.dma_semaphore, #tpu.memory_space<semaphore_mem>>)
      %320 = arith.index_cast %276 : i32 to index
      %c6_118 = arith.constant 6 : index
      %321 = memref.load %arg2[%320, %c6_118] : memref<1x16xi32, #tpu.memory_space<smem>>
      %c0_i32_119 = arith.constant 0 : i32
      %322 = tpu.memref_slice %arg9[%321, %c0_i32_119] : memref<128x128xf32, #tpu.memory_space<any>> -> memref<1x128xf32, #tpu.memory_space<any>>
      %c6_i32_120 = arith.constant 6 : i32
      %c0_i32_121 = arith.constant 0 : i32
      %323 = tpu.memref_slice %arg12[%277, %c6_i32_120, %c0_i32_121] : memref<2x16x128xf32, #tpu.memory_space<vmem>> -> memref<1x1x128xf32, #tpu.memory_space<vmem>>
      %324 = tpu.memref_squeeze %323 : memref<1x1x128xf32, #tpu.memory_space<vmem>> -> memref<1x128xf32, #tpu.memory_space<vmem>>
      %325 = tpu.memref_slice %arg13[%277] : memref<2x!tpu.dma_semaphore, #tpu.memory_space<semaphore_mem>> -> memref<1x!tpu.dma_semaphore, #tpu.memory_space<semaphore_mem>>
      %326 = tpu.memref_squeeze %325 : memref<1x!tpu.dma_semaphore, #tpu.memory_space<semaphore_mem>> -> memref<!tpu.dma_semaphore, #tpu.memory_space<semaphore_mem>>
      tpu.enqueue_dma source(%322 : memref<1x128xf32, #tpu.memory_space<any>>) target(%324 : memref<1x128xf32, #tpu.memory_space<vmem>>) target_semaphore(%326 : memref<!tpu.dma_semaphore, #tpu.memory_space<semaphore_mem>>)
      %327 = arith.index_cast %276 : i32 to index
      %c7_122 = arith.constant 7 : index
      %328 = memref.load %arg2[%327, %c7_122] : memref<1x16xi32, #tpu.memory_space<smem>>
      %c0_i32_123 = arith.constant 0 : i32
      %329 = tpu.memref_slice %arg9[%328, %c0_i32_123] : memref<128x128xf32, #tpu.memory_space<any>> -> memref<1x128xf32, #tpu.memory_space<any>>
      %c7_i32_124 = arith.constant 7 : i32
      %c0_i32_125 = arith.constant 0 : i32
      %330 = tpu.memref_slice %arg12[%277, %c7_i32_124, %c0_i32_125] : memref<2x16x128xf32, #tpu.memory_space<vmem>> -> memref<1x1x128xf32, #tpu.memory_space<vmem>>
      %331 = tpu.memref_squeeze %330 : memref<1x1x128xf32, #tpu.memory_space<vmem>> -> memref<1x128xf32, #tpu.memory_space<vmem>>
      %332 = tpu.memref_slice %arg13[%277] : memref<2x!tpu.dma_semaphore, #tpu.memory_space<semaphore_mem>> -> memref<1x!tpu.dma_semaphore, #tpu.memory_space<semaphore_mem>>
      %333 = tpu.memref_squeeze %332 : memref<1x!tpu.dma_semaphore, #tpu.memory_space<semaphore_mem>> -> memref<!tpu.dma_semaphore, #tpu.memory_space<semaphore_mem>>
      tpu.enqueue_dma source(%329 : memref<1x128xf32, #tpu.memory_space<any>>) target(%331 : memref<1x128xf32, #tpu.memory_space<vmem>>) target_semaphore(%333 : memref<!tpu.dma_semaphore, #tpu.memory_space<semaphore_mem>>)
      %334 = arith.index_cast %276 : i32 to index
      %c8_126 = arith.constant 8 : index
      %335 = memref.load %arg2[%334, %c8_126] : memref<1x16xi32, #tpu.memory_space<smem>>
      %c0_i32_127 = arith.constant 0 : i32
      %336 = tpu.memref_slice %arg9[%335, %c0_i32_127] : memref<128x128xf32, #tpu.memory_space<any>> -> memref<1x128xf32, #tpu.memory_space<any>>
      %c8_i32_128 = arith.constant 8 : i32
      %c0_i32_129 = arith.constant 0 : i32
      %337 = tpu.memref_slice %arg12[%277, %c8_i32_128, %c0_i32_129] : memref<2x16x128xf32, #tpu.memory_space<vmem>> -> memref<1x1x128xf32, #tpu.memory_space<vmem>>
      %338 = tpu.memref_squeeze %337 : memref<1x1x128xf32, #tpu.memory_space<vmem>> -> memref<1x128xf32, #tpu.memory_space<vmem>>
      %339 = tpu.memref_slice %arg13[%277] : memref<2x!tpu.dma_semaphore, #tpu.memory_space<semaphore_mem>> -> memref<1x!tpu.dma_semaphore, #tpu.memory_space<semaphore_mem>>
      %340 = tpu.memref_squeeze %339 : memref<1x!tpu.dma_semaphore, #tpu.memory_space<semaphore_mem>> -> memref<!tpu.dma_semaphore, #tpu.memory_space<semaphore_mem>>
      tpu.enqueue_dma source(%336 : memref<1x128xf32, #tpu.memory_space<any>>) target(%338 : memref<1x128xf32, #tpu.memory_space<vmem>>) target_semaphore(%340 : memref<!tpu.dma_semaphore, #tpu.memory_space<semaphore_mem>>)
      %341 = arith.index_cast %276 : i32 to index
      %c9_130 = arith.constant 9 : index
      %342 = memref.load %arg2[%341, %c9_130] : memref<1x16xi32, #tpu.memory_space<smem>>
      %c0_i32_131 = arith.constant 0 : i32
      %343 = tpu.memref_slice %arg9[%342, %c0_i32_131] : memref<128x128xf32, #tpu.memory_space<any>> -> memref<1x128xf32, #tpu.memory_space<any>>
      %c9_i32_132 = arith.constant 9 : i32
      %c0_i32_133 = arith.constant 0 : i32
      %344 = tpu.memref_slice %arg12[%277, %c9_i32_132, %c0_i32_133] : memref<2x16x128xf32, #tpu.memory_space<vmem>> -> memref<1x1x128xf32, #tpu.memory_space<vmem>>
      %345 = tpu.memref_squeeze %344 : memref<1x1x128xf32, #tpu.memory_space<vmem>> -> memref<1x128xf32, #tpu.memory_space<vmem>>
      %346 = tpu.memref_slice %arg13[%277] : memref<2x!tpu.dma_semaphore, #tpu.memory_space<semaphore_mem>> -> memref<1x!tpu.dma_semaphore, #tpu.memory_space<semaphore_mem>>
      %347 = tpu.memref_squeeze %346 : memref<1x!tpu.dma_semaphore, #tpu.memory_space<semaphore_mem>> -> memref<!tpu.dma_semaphore, #tpu.memory_space<semaphore_mem>>
      tpu.enqueue_dma source(%343 : memref<1x128xf32, #tpu.memory_space<any>>) target(%345 : memref<1x128xf32, #tpu.memory_space<vmem>>) target_semaphore(%347 : memref<!tpu.dma_semaphore, #tpu.memory_space<semaphore_mem>>)
      %348 = arith.index_cast %276 : i32 to index
      %c10_134 = arith.constant 10 : index
      %349 = memref.load %arg2[%348, %c10_134] : memref<1x16xi32, #tpu.memory_space<smem>>
      %c0_i32_135 = arith.constant 0 : i32
      %350 = tpu.memref_slice %arg9[%349, %c0_i32_135] : memref<128x128xf32, #tpu.memory_space<any>> -> memref<1x128xf32, #tpu.memory_space<any>>
      %c10_i32_136 = arith.constant 10 : i32
      %c0_i32_137 = arith.constant 0 : i32
      %351 = tpu.memref_slice %arg12[%277, %c10_i32_136, %c0_i32_137] : memref<2x16x128xf32, #tpu.memory_space<vmem>> -> memref<1x1x128xf32, #tpu.memory_space<vmem>>
      %352 = tpu.memref_squeeze %351 : memref<1x1x128xf32, #tpu.memory_space<vmem>> -> memref<1x128xf32, #tpu.memory_space<vmem>>
      %353 = tpu.memref_slice %arg13[%277] : memref<2x!tpu.dma_semaphore, #tpu.memory_space<semaphore_mem>> -> memref<1x!tpu.dma_semaphore, #tpu.memory_space<semaphore_mem>>
      %354 = tpu.memref_squeeze %353 : memref<1x!tpu.dma_semaphore, #tpu.memory_space<semaphore_mem>> -> memref<!tpu.dma_semaphore, #tpu.memory_space<semaphore_mem>>
      tpu.enqueue_dma source(%350 : memref<1x128xf32, #tpu.memory_space<any>>) target(%352 : memref<1x128xf32, #tpu.memory_space<vmem>>) target_semaphore(%354 : memref<!tpu.dma_semaphore, #tpu.memory_space<semaphore_mem>>)
      %355 = arith.index_cast %276 : i32 to index
      %c11_138 = arith.constant 11 : index
      %356 = memref.load %arg2[%355, %c11_138] : memref<1x16xi32, #tpu.memory_space<smem>>
      %c0_i32_139 = arith.constant 0 : i32
      %357 = tpu.memref_slice %arg9[%356, %c0_i32_139] : memref<128x128xf32, #tpu.memory_space<any>> -> memref<1x128xf32, #tpu.memory_space<any>>
      %c11_i32_140 = arith.constant 11 : i32
      %c0_i32_141 = arith.constant 0 : i32
      %358 = tpu.memref_slice %arg12[%277, %c11_i32_140, %c0_i32_141] : memref<2x16x128xf32, #tpu.memory_space<vmem>> -> memref<1x1x128xf32, #tpu.memory_space<vmem>>
      %359 = tpu.memref_squeeze %358 : memref<1x1x128xf32, #tpu.memory_space<vmem>> -> memref<1x128xf32, #tpu.memory_space<vmem>>
      %360 = tpu.memref_slice %arg13[%277] : memref<2x!tpu.dma_semaphore, #tpu.memory_space<semaphore_mem>> -> memref<1x!tpu.dma_semaphore, #tpu.memory_space<semaphore_mem>>
      %361 = tpu.memref_squeeze %360 : memref<1x!tpu.dma_semaphore, #tpu.memory_space<semaphore_mem>> -> memref<!tpu.dma_semaphore, #tpu.memory_space<semaphore_mem>>
      tpu.enqueue_dma source(%357 : memref<1x128xf32, #tpu.memory_space<any>>) target(%359 : memref<1x128xf32, #tpu.memory_space<vmem>>) target_semaphore(%361 : memref<!tpu.dma_semaphore, #tpu.memory_space<semaphore_mem>>)
      %362 = arith.index_cast %276 : i32 to index
      %c12_142 = arith.constant 12 : index
      %363 = memref.load %arg2[%362, %c12_142] : memref<1x16xi32, #tpu.memory_space<smem>>
      %c0_i32_143 = arith.constant 0 : i32
      %364 = tpu.memref_slice %arg9[%363, %c0_i32_143] : memref<128x128xf32, #tpu.memory_space<any>> -> memref<1x128xf32, #tpu.memory_space<any>>
      %c12_i32_144 = arith.constant 12 : i32
      %c0_i32_145 = arith.constant 0 : i32
      %365 = tpu.memref_slice %arg12[%277, %c12_i32_144, %c0_i32_145] : memref<2x16x128xf32, #tpu.memory_space<vmem>> -> memref<1x1x128xf32, #tpu.memory_space<vmem>>
      %366 = tpu.memref_squeeze %365 : memref<1x1x128xf32, #tpu.memory_space<vmem>> -> memref<1x128xf32, #tpu.memory_space<vmem>>
      %367 = tpu.memref_slice %arg13[%277] : memref<2x!tpu.dma_semaphore, #tpu.memory_space<semaphore_mem>> -> memref<1x!tpu.dma_semaphore, #tpu.memory_space<semaphore_mem>>
      %368 = tpu.memref_squeeze %367 : memref<1x!tpu.dma_semaphore, #tpu.memory_space<semaphore_mem>> -> memref<!tpu.dma_semaphore, #tpu.memory_space<semaphore_mem>>
      tpu.enqueue_dma source(%364 : memref<1x128xf32, #tpu.memory_space<any>>) target(%366 : memref<1x128xf32, #tpu.memory_space<vmem>>) target_semaphore(%368 : memref<!tpu.dma_semaphore, #tpu.memory_space<semaphore_mem>>)
      %369 = arith.index_cast %276 : i32 to index
      %c13_146 = arith.constant 13 : index
      %370 = memref.load %arg2[%369, %c13_146] : memref<1x16xi32, #tpu.memory_space<smem>>
      %c0_i32_147 = arith.constant 0 : i32
      %371 = tpu.memref_slice %arg9[%370, %c0_i32_147] : memref<128x128xf32, #tpu.memory_space<any>> -> memref<1x128xf32, #tpu.memory_space<any>>
      %c13_i32_148 = arith.constant 13 : i32
      %c0_i32_149 = arith.constant 0 : i32
      %372 = tpu.memref_slice %arg12[%277, %c13_i32_148, %c0_i32_149] : memref<2x16x128xf32, #tpu.memory_space<vmem>> -> memref<1x1x128xf32, #tpu.memory_space<vmem>>
      %373 = tpu.memref_squeeze %372 : memref<1x1x128xf32, #tpu.memory_space<vmem>> -> memref<1x128xf32, #tpu.memory_space<vmem>>
      %374 = tpu.memref_slice %arg13[%277] : memref<2x!tpu.dma_semaphore, #tpu.memory_space<semaphore_mem>> -> memref<1x!tpu.dma_semaphore, #tpu.memory_space<semaphore_mem>>
      %375 = tpu.memref_squeeze %374 : memref<1x!tpu.dma_semaphore, #tpu.memory_space<semaphore_mem>> -> memref<!tpu.dma_semaphore, #tpu.memory_space<semaphore_mem>>
      tpu.enqueue_dma source(%371 : memref<1x128xf32, #tpu.memory_space<any>>) target(%373 : memref<1x128xf32, #tpu.memory_space<vmem>>) target_semaphore(%375 : memref<!tpu.dma_semaphore, #tpu.memory_space<semaphore_mem>>)
      %376 = arith.index_cast %276 : i32 to index
      %c14_150 = arith.constant 14 : index
      %377 = memref.load %arg2[%376, %c14_150] : memref<1x16xi32, #tpu.memory_space<smem>>
      %c0_i32_151 = arith.constant 0 : i32
      %378 = tpu.memref_slice %arg9[%377, %c0_i32_151] : memref<128x128xf32, #tpu.memory_space<any>> -> memref<1x128xf32, #tpu.memory_space<any>>
      %c14_i32_152 = arith.constant 14 : i32
      %c0_i32_153 = arith.constant 0 : i32
      %379 = tpu.memref_slice %arg12[%277, %c14_i32_152, %c0_i32_153] : memref<2x16x128xf32, #tpu.memory_space<vmem>> -> memref<1x1x128xf32, #tpu.memory_space<vmem>>
      %380 = tpu.memref_squeeze %379 : memref<1x1x128xf32, #tpu.memory_space<vmem>> -> memref<1x128xf32, #tpu.memory_space<vmem>>
      %381 = tpu.memref_slice %arg13[%277] : memref<2x!tpu.dma_semaphore, #tpu.memory_space<semaphore_mem>> -> memref<1x!tpu.dma_semaphore, #tpu.memory_space<semaphore_mem>>
      %382 = tpu.memref_squeeze %381 : memref<1x!tpu.dma_semaphore, #tpu.memory_space<semaphore_mem>> -> memref<!tpu.dma_semaphore, #tpu.memory_space<semaphore_mem>>
      tpu.enqueue_dma source(%378 : memref<1x128xf32, #tpu.memory_space<any>>) target(%380 : memref<1x128xf32, #tpu.memory_space<vmem>>) target_semaphore(%382 : memref<!tpu.dma_semaphore, #tpu.memory_space<semaphore_mem>>)
      %383 = arith.index_cast %276 : i32 to index
      %c15_154 = arith.constant 15 : index
      %384 = memref.load %arg2[%383, %c15_154] : memref<1x16xi32, #tpu.memory_space<smem>>
      %c0_i32_155 = arith.constant 0 : i32
      %385 = tpu.memref_slice %arg9[%384, %c0_i32_155] : memref<128x128xf32, #tpu.memory_space<any>> -> memref<1x128xf32, #tpu.memory_space<any>>
      %c15_i32_156 = arith.constant 15 : i32
      %c0_i32_157 = arith.constant 0 : i32
      %386 = tpu.memref_slice %arg12[%277, %c15_i32_156, %c0_i32_157] : memref<2x16x128xf32, #tpu.memory_space<vmem>> -> memref<1x1x128xf32, #tpu.memory_space<vmem>>
      %387 = tpu.memref_squeeze %386 : memref<1x1x128xf32, #tpu.memory_space<vmem>> -> memref<1x128xf32, #tpu.memory_space<vmem>>
      %388 = tpu.memref_slice %arg13[%277] : memref<2x!tpu.dma_semaphore, #tpu.memory_space<semaphore_mem>> -> memref<1x!tpu.dma_semaphore, #tpu.memory_space<semaphore_mem>>
      %389 = tpu.memref_squeeze %388 : memref<1x!tpu.dma_semaphore, #tpu.memory_space<semaphore_mem>> -> memref<!tpu.dma_semaphore, #tpu.memory_space<semaphore_mem>>
      tpu.enqueue_dma source(%385 : memref<1x128xf32, #tpu.memory_space<any>>) target(%387 : memref<1x128xf32, #tpu.memory_space<vmem>>) target_semaphore(%389 : memref<!tpu.dma_semaphore, #tpu.memory_space<semaphore_mem>>)
    } else {
    }
    %131 = arith.index_cast %11 : i32 to index
    %c0_44 = arith.constant 0 : index
    %c0_45 = arith.constant 0 : index
    %132 = vector.load %arg12[%131, %c0_44, %c0_45] : memref<2x16x128xf32, #tpu.memory_space<vmem>>, vector<1x16x128xf32>
    %133 = vector.shape_cast %132 : vector<1x16x128xf32> to vector<16x128xf32>
    %c0_46 = arith.constant 0 : index
    %c0_47 = arith.constant 0 : index
    %134 = vector.load %arg5[%c0_46, %c0_47] : memref<16x128xbf16, #tpu.memory_space<vmem>>, vector<16x128xbf16>
    %135 = arith.extf %134 : vector<16x128xbf16> to vector<16x128xf32>
    %136 = arith.addf %133, %135 : vector<16x128xf32>
    %c0_48 = arith.constant 0 : index
    %c0_49 = arith.constant 0 : index
    %137 = vector.load %arg8[%c0_48, %c0_49] : memref<8x128xbf16, #tpu.memory_space<vmem>>, vector<8x128xbf16>
    %138 = arith.extf %137 : vector<8x128xbf16> to vector<8x128xf32>
    %c0_50 = arith.constant 0 : index
    %c0_51 = arith.constant 0 : index
    %139 = vector.load %arg4[%c0_50, %c0_51] : memref<16x1xi32, #tpu.memory_space<vmem>>, vector<16x1xi32>
    %c0_i32_52 = arith.constant 0 : i32
    %140 = vector.broadcast %c0_i32_52 : i32 to vector<16x1xi32>
    %141 = arith.cmpi eq, %139, %140 : vector<16x1xi32>
    %142 = vector.extract_strided_slice %138 {offsets = [0, 0], sizes = [1, 128], strides = [1, 1]} : vector<8x128xf32> to vector<1x128xf32>
    %cst = arith.constant 0.000000e+00 : f32
    %143 = vector.shape_cast %141 : vector<16x1xi1> to vector<16x1xi1>
    %144 = vector.broadcast %143 : vector<16x1xi1> to vector<16x128xi1>
    %145 = vector.shape_cast %142 : vector<1x128xf32> to vector<1x128xf32>
    %146 = vector.broadcast %145 : vector<1x128xf32> to vector<16x128xf32>
    %147 = vector.broadcast %cst : f32 to vector<16x128xf32>
    %148 = arith.select %144, %146, %147 : vector<16x128xi1>, vector<16x128xf32>
    %149 = arith.addf %136, %148 : vector<16x128xf32>
    %c1_i32_53 = arith.constant 1 : i32
    %150 = vector.broadcast %c1_i32_53 : i32 to vector<16x1xi32>
    %151 = arith.cmpi eq, %139, %150 : vector<16x1xi32>
    %152 = vector.extract_strided_slice %138 {offsets = [1, 0], sizes = [1, 128], strides = [1, 1]} : vector<8x128xf32> to vector<1x128xf32>
    %cst_54 = arith.constant 0.000000e+00 : f32
    %153 = vector.shape_cast %151 : vector<16x1xi1> to vector<16x1xi1>
    %154 = vector.broadcast %153 : vector<16x1xi1> to vector<16x128xi1>
    %155 = vector.shape_cast %152 : vector<1x128xf32> to vector<1x128xf32>
    %156 = vector.broadcast %155 : vector<1x128xf32> to vector<16x128xf32>
    %157 = vector.broadcast %cst_54 : f32 to vector<16x128xf32>
    %158 = arith.select %154, %156, %157 : vector<16x128xi1>, vector<16x128xf32>
    %159 = arith.addf %149, %158 : vector<16x128xf32>
    %c2_i32_55 = arith.constant 2 : i32
    %160 = vector.broadcast %c2_i32_55 : i32 to vector<16x1xi32>
    %161 = arith.cmpi eq, %139, %160 : vector<16x1xi32>
    %162 = vector.extract_strided_slice %138 {offsets = [2, 0], sizes = [1, 128], strides = [1, 1]} : vector<8x128xf32> to vector<1x128xf32>
    %cst_56 = arith.constant 0.000000e+00 : f32
    %163 = vector.shape_cast %161 : vector<16x1xi1> to vector<16x1xi1>
    %164 = vector.broadcast %163 : vector<16x1xi1> to vector<16x128xi1>
    %165 = vector.shape_cast %162 : vector<1x128xf32> to vector<1x128xf32>
    %166 = vector.broadcast %165 : vector<1x128xf32> to vector<16x128xf32>
    %167 = vector.broadcast %cst_56 : f32 to vector<16x128xf32>
    %168 = arith.select %164, %166, %167 : vector<16x128xi1>, vector<16x128xf32>
    %169 = arith.addf %159, %168 : vector<16x128xf32>
    %c3_i32_57 = arith.constant 3 : i32
    %170 = vector.broadcast %c3_i32_57 : i32 to vector<16x1xi32>
    %171 = arith.cmpi eq, %139, %170 : vector<16x1xi32>
    %172 = vector.extract_strided_slice %138 {offsets = [3, 0], sizes = [1, 128], strides = [1, 1]} : vector<8x128xf32> to vector<1x128xf32>
    %cst_58 = arith.constant 0.000000e+00 : f32
    %173 = vector.shape_cast %171 : vector<16x1xi1> to vector<16x1xi1>
    %174 = vector.broadcast %173 : vector<16x1xi1> to vector<16x128xi1>
    %175 = vector.shape_cast %172 : vector<1x128xf32> to vector<1x128xf32>
    %176 = vector.broadcast %175 : vector<1x128xf32> to vector<16x128xf32>
    %177 = vector.broadcast %cst_58 : f32 to vector<16x128xf32>
    %178 = arith.select %174, %176, %177 : vector<16x128xi1>, vector<16x128xf32>
    %179 = arith.addf %169, %178 : vector<16x128xf32>
    %c4_i32_59 = arith.constant 4 : i32
    %180 = vector.broadcast %c4_i32_59 : i32 to vector<16x1xi32>
    %181 = arith.cmpi eq, %139, %180 : vector<16x1xi32>
    %182 = vector.extract_strided_slice %138 {offsets = [4, 0], sizes = [1, 128], strides = [1, 1]} : vector<8x128xf32> to vector<1x128xf32>
    %cst_60 = arith.constant 0.000000e+00 : f32
    %183 = vector.shape_cast %181 : vector<16x1xi1> to vector<16x1xi1>
    %184 = vector.broadcast %183 : vector<16x1xi1> to vector<16x128xi1>
    %185 = vector.shape_cast %182 : vector<1x128xf32> to vector<1x128xf32>
    %186 = vector.broadcast %185 : vector<1x128xf32> to vector<16x128xf32>
    %187 = vector.broadcast %cst_60 : f32 to vector<16x128xf32>
    %188 = arith.select %184, %186, %187 : vector<16x128xi1>, vector<16x128xf32>
    %189 = arith.addf %179, %188 : vector<16x128xf32>
    %c5_i32_61 = arith.constant 5 : i32
    %190 = vector.broadcast %c5_i32_61 : i32 to vector<16x1xi32>
    %191 = arith.cmpi eq, %139, %190 : vector<16x1xi32>
    %192 = vector.extract_strided_slice %138 {offsets = [5, 0], sizes = [1, 128], strides = [1, 1]} : vector<8x128xf32> to vector<1x128xf32>
    %cst_62 = arith.constant 0.000000e+00 : f32
    %193 = vector.shape_cast %191 : vector<16x1xi1> to vector<16x1xi1>
    %194 = vector.broadcast %193 : vector<16x1xi1> to vector<16x128xi1>
    %195 = vector.shape_cast %192 : vector<1x128xf32> to vector<1x128xf32>
    %196 = vector.broadcast %195 : vector<1x128xf32> to vector<16x128xf32>
    %197 = vector.broadcast %cst_62 : f32 to vector<16x128xf32>
    %198 = arith.select %194, %196, %197 : vector<16x128xi1>, vector<16x128xf32>
    %199 = arith.addf %189, %198 : vector<16x128xf32>
    %c6_i32_63 = arith.constant 6 : i32
    %200 = vector.broadcast %c6_i32_63 : i32 to vector<16x1xi32>
    %201 = arith.cmpi eq, %139, %200 : vector<16x1xi32>
    %202 = vector.extract_strided_slice %138 {offsets = [6, 0], sizes = [1, 128], strides = [1, 1]} : vector<8x128xf32> to vector<1x128xf32>
    %cst_64 = arith.constant 0.000000e+00 : f32
    %203 = vector.shape_cast %201 : vector<16x1xi1> to vector<16x1xi1>
    %204 = vector.broadcast %203 : vector<16x1xi1> to vector<16x128xi1>
    %205 = vector.shape_cast %202 : vector<1x128xf32> to vector<1x128xf32>
    %206 = vector.broadcast %205 : vector<1x128xf32> to vector<16x128xf32>
    %207 = vector.broadcast %cst_64 : f32 to vector<16x128xf32>
    %208 = arith.select %204, %206, %207 : vector<16x128xi1>, vector<16x128xf32>
    %209 = arith.addf %199, %208 : vector<16x128xf32>
    %c7_i32_65 = arith.constant 7 : i32
    %210 = vector.broadcast %c7_i32_65 : i32 to vector<16x1xi32>
    %211 = arith.cmpi eq, %139, %210 : vector<16x1xi32>
    %212 = vector.extract_strided_slice %138 {offsets = [7, 0], sizes = [1, 128], strides = [1, 1]} : vector<8x128xf32> to vector<1x128xf32>
    %cst_66 = arith.constant 0.000000e+00 : f32
    %213 = vector.shape_cast %211 : vector<16x1xi1> to vector<16x1xi1>
    %214 = vector.broadcast %213 : vector<16x1xi1> to vector<16x128xi1>
    %215 = vector.shape_cast %212 : vector<1x128xf32> to vector<1x128xf32>
    %216 = vector.broadcast %215 : vector<1x128xf32> to vector<16x128xf32>
    %217 = vector.broadcast %cst_66 : f32 to vector<16x128xf32>
    %218 = arith.select %214, %216, %217 : vector<16x128xi1>, vector<16x128xf32>
    %219 = arith.addf %209, %218 : vector<16x128xf32>
    %cst_67 = arith.constant dense<0.000000e+00> : vector<16xf32>
    %220 = vector.multi_reduction <add>, %219, %cst_67 [1] : vector<16x128xf32> to vector<16xf32>
    %221 = vector.shape_cast %220 : vector<16xf32> to vector<16x1xf32>
    %cst_68 = arith.constant 1.280000e+02 : f32
    %222 = vector.broadcast %cst_68 : f32 to vector<16x1xf32>
    %223 = arith.divf %221, %222 : vector<16x1xf32>
    %224 = vector.broadcast %223 : vector<16x1xf32> to vector<16x128xf32>
    %225 = arith.subf %219, %224 : vector<16x128xf32>
    %226 = arith.mulf %225, %225 : vector<16x128xf32>
    %cst_69 = arith.constant dense<0.000000e+00> : vector<16xf32>
    %227 = vector.multi_reduction <add>, %226, %cst_69 [1] : vector<16x128xf32> to vector<16xf32>
    %228 = vector.shape_cast %227 : vector<16xf32> to vector<16x1xf32>
    %cst_70 = arith.constant 1.280000e+02 : f32
    %229 = vector.broadcast %cst_70 : f32 to vector<16x1xf32>
    %230 = arith.divf %228, %229 : vector<16x1xf32>
    %231 = vector.broadcast %223 : vector<16x1xf32> to vector<16x128xf32>
    %232 = arith.subf %219, %231 : vector<16x128xf32>
    %cst_71 = arith.constant 9.99999996E-13 : f32
    %233 = vector.broadcast %cst_71 : f32 to vector<16x1xf32>
    %234 = arith.addf %230, %233 : vector<16x1xf32>
    %235 = math.rsqrt %234 : vector<16x1xf32>
    %236 = vector.broadcast %235 : vector<16x1xf32> to vector<16x128xf32>
    %237 = arith.mulf %232, %236 : vector<16x128xf32>
    %c0_72 = arith.constant 0 : index
    %c0_73 = arith.constant 0 : index
    %238 = vector.load %arg6[%c0_72, %c0_73] : memref<1x128xf32, #tpu.memory_space<vmem>>, vector<1x128xf32>
    %239 = vector.broadcast %238 : vector<1x128xf32> to vector<16x128xf32>
    %240 = arith.mulf %237, %239 : vector<16x128xf32>
    %c0_74 = arith.constant 0 : index
    %c0_75 = arith.constant 0 : index
    %241 = vector.load %arg7[%c0_74, %c0_75] : memref<1x128xf32, #tpu.memory_space<vmem>>, vector<1x128xf32>
    %242 = vector.broadcast %241 : vector<1x128xf32> to vector<16x128xf32>
    %243 = arith.addf %240, %242 : vector<16x128xf32>
    %c0_76 = arith.constant 0 : index
    %c0_77 = arith.constant 0 : index
    %244 = vector.load %arg10[%c0_76, %c0_77] : memref<16x128xf32, #tpu.memory_space<vmem>>, vector<16x128xf32>
    tpu.vector_store %arg10[%c0_76, %c0_77], %243 {strides = array<i32>} : memref<16x128xf32, #tpu.memory_space<vmem>>, vector<16x128xf32>,
    %c0_78 = arith.constant 0 : index
    %c0_79 = arith.constant 0 : index
    %245 = vector.load %arg3[%c0_78, %c0_79] : memref<16x1xf32, #tpu.memory_space<vmem>>, vector<16x1xf32>
    %246 = vector.broadcast %245 : vector<16x1xf32> to vector<16x128xf32>
    %247 = arith.mulf %243, %246 : vector<16x128xf32>
    %248 = vector.extract_strided_slice %247 {offsets = [0, 0], sizes = [8, 128], strides = [1, 1]} : vector<16x128xf32> to vector<8x128xf32>
    %249 = vector.extract_strided_slice %245 {offsets = [0, 0], sizes = [8, 1], strides = [1, 1]} : vector<16x1xf32> to vector<8x1xf32>
    %cst_80 = arith.constant dense<0.000000e+00> : vector<128xf32>
    %250 = vector.multi_reduction <add>, %248, %cst_80 [0] : vector<8x128xf32> to vector<128xf32>
    %251 = vector.shape_cast %250 : vector<128xf32> to vector<1x128xf32>
    %252 = vector.shape_cast %249 : vector<8x1xf32> to vector<1x8x1xf32>
    %cst_81 = arith.constant dense<0.000000e+00> : vector<1xf32>
    %253 = vector.multi_reduction <add>, %252, %cst_81 [1, 2] : vector<1x8x1xf32> to vector<1xf32>
    %254 = vector.shape_cast %253 : vector<1xf32> to vector<1x1x1xf32>
    %255 = vector.extract %254[0, 0, 0] : f32 from vector<1x1x1xf32>
    %cst_82 = arith.constant 9.99999971E-10 : f32
    %256 = arith.maximumf %255, %cst_82 : f32
    %257 = vector.broadcast %256 : f32 to vector<1x128xf32>
    %258 = arith.divf %251, %257 : vector<1x128xf32>
    %c0_83 = arith.constant 0 : index
    %c0_84 = arith.constant 0 : index
    %c0_85 = arith.constant 0 : index
    %259 = vector.load %arg11[%c0_83, %c0_84, %c0_85] : memref<2x1x128xf32, #tpu.memory_space<vmem>>, vector<1x1x128xf32>
    %260 = vector.shape_cast %259 : vector<1x1x128xf32> to vector<1x128xf32>
    %261 = vector.shape_cast %258 : vector<1x128xf32> to vector<1x1x128xf32>
    tpu.vector_store %arg11[%c0_83, %c0_84, %c0_85], %261 {strides = array<i32>} : memref<2x1x128xf32, #tpu.memory_space<vmem>>, vector<1x1x128xf32>,
    %262 = vector.extract_strided_slice %247 {offsets = [8, 0], sizes = [8, 128], strides = [1, 1]} : vector<16x128xf32> to vector<8x128xf32>
    %263 = vector.extract_strided_slice %245 {offsets = [8, 0], sizes = [8, 1], strides = [1, 1]} : vector<16x1xf32> to vector<8x1xf32>
    %cst_86 = arith.constant dense<0.000000e+00> : vector<128xf32>
    %264 = vector.multi_reduction <add>, %262, %cst_86 [0] : vector<8x128xf32> to vector<128xf32>
    %265 = vector.shape_cast %264 : vector<128xf32> to vector<1x128xf32>
    %266 = vector.shape_cast %263 : vector<8x1xf32> to vector<1x8x1xf32>
    %cst_87 = arith.constant dense<0.000000e+00> : vector<1xf32>
    %267 = vector.multi_reduction <add>, %266, %cst_87 [1, 2] : vector<1x8x1xf32> to vector<1xf32>
    %268 = vector.shape_cast %267 : vector<1xf32> to vector<1x1x1xf32>
    %269 = vector.extract %268[0, 0, 0] : f32 from vector<1x1x1xf32>
    %cst_88 = arith.constant 9.99999971E-10 : f32
    %270 = arith.maximumf %269, %cst_88 : f32
    %271 = vector.broadcast %270 : f32 to vector<1x128xf32>
    %272 = arith.divf %265, %271 : vector<1x128xf32>
    %c1_89 = arith.constant 1 : index
    %c0_90 = arith.constant 0 : index
    %c0_91 = arith.constant 0 : index
    %273 = vector.load %arg11[%c1_89, %c0_90, %c0_91] : memref<2x1x128xf32, #tpu.memory_space<vmem>>, vector<1x1x128xf32>
    %274 = vector.shape_cast %273 : vector<1x1x128xf32> to vector<1x128xf32>
    %275 = vector.shape_cast %272 : vector<1x128xf32> to vector<1x1x128xf32>
    tpu.vector_store %arg11[%c1_89, %c0_90, %c0_91], %275 {strides = array<i32>} : memref<2x1x128xf32, #tpu.memory_space<vmem>>, vector<1x1x128xf32>,
    return
  }
  func.func @transform_0(%arg0: i32, %arg1: i32, %arg2: memref<1x16xi32, #tpu.memory_space<smem>>) -> (i32, i32) {
    %c1_i32 = arith.constant 1 : i32
    %0 = arith.muli %arg0, %c1_i32 : i32
    %1 = arith.addi %0, %arg1 : i32
    %c0_i32 = arith.constant 0 : i32
    %c0_i32_0 = arith.constant 0 : i32
    return %1, %c0_i32 : i32, i32
  }
  func.func @transform_1(%arg0: i32, %arg1: i32, %arg2: memref<1x16xi32, #tpu.memory_space<smem>>) -> (i32, i32) {
    %c1_i32 = arith.constant 1 : i32
    %0 = arith.muli %arg0, %c1_i32 : i32
    %1 = arith.addi %0, %arg1 : i32
    %c0_i32 = arith.constant 0 : i32
    %c0_i32_0 = arith.constant 0 : i32
    return %1, %c0_i32 : i32, i32
  }
  func.func @transform_2(%arg0: i32, %arg1: i32, %arg2: memref<1x16xi32, #tpu.memory_space<smem>>) -> (i32, i32) {
    %c0_i32 = arith.constant 0 : i32
    %c0_i32_0 = arith.constant 0 : i32
    %c0_i32_1 = arith.constant 0 : i32
    return %c0_i32, %c0_i32_0 : i32, i32
  }
  func.func @transform_3(%arg0: i32, %arg1: i32, %arg2: memref<1x16xi32, #tpu.memory_space<smem>>) -> (i32, i32) {
    %c0_i32 = arith.constant 0 : i32
    %c0_i32_0 = arith.constant 0 : i32
    %c0_i32_1 = arith.constant 0 : i32
    return %c0_i32, %c0_i32_0 : i32, i32
  }
  func.func @transform_4(%arg0: i32, %arg1: i32, %arg2: memref<1x16xi32, #tpu.memory_space<smem>>) -> (i32, i32) {
    %c0_i32 = arith.constant 0 : i32
    %c0_i32_0 = arith.constant 0 : i32
    %c0_i32_1 = arith.constant 0 : i32
    return %c0_i32, %c0_i32_0 : i32, i32
  }
  func.func @transform_5(%arg0: i32, %arg1: i32, %arg2: memref<1x16xi32, #tpu.memory_space<smem>>) -> (i32, i32) {
    %c0_i32 = arith.constant 0 : i32
    %c0_i32_0 = arith.constant 0 : i32
    %c0_i32_1 = arith.constant 0 : i32
    return %c0_i32, %c0_i32_0 : i32, i32
  }
  func.func @transform_7(%arg0: i32, %arg1: i32, %arg2: memref<1x16xi32, #tpu.memory_space<smem>>) -> (i32, i32) {
    %c1_i32 = arith.constant 1 : i32
    %0 = arith.muli %arg0, %c1_i32 : i32
    %1 = arith.addi %0, %arg1 : i32
    %c0_i32 = arith.constant 0 : i32
    %c0_i32_0 = arith.constant 0 : i32
    return %1, %c0_i32 : i32, i32
  }
  func.func @transform_8(%arg0: i32, %arg1: i32, %arg2: memref<1x16xi32, #tpu.memory_space<smem>>) -> (i32, i32, i32) {
    %c1_i32 = arith.constant 1 : i32
    %0 = arith.muli %arg0, %c1_i32 : i32
    %1 = arith.addi %0, %arg1 : i32
    %c0_i32 = arith.constant 0 : i32
    %c0_i32_0 = arith.constant 0 : i32
    %c0_i32_1 = arith.constant 0 : i32
    return %1, %c0_i32, %c0_i32_0 : i32, i32, i32
  }
}

</mosaic_0001>

<llo_original>
// kernel: tpu_custom_call.1
$region0: #{tpu_custom_call.1}
  #allocation0 [shape = 'u32[]', space=smem, size = 0x4, offset = 0x4, fixed_abs, tag = 'smem constant byte address 0x4 - core index']
  #allocation1 [shape = 'u32[144,128]{1,0:T(1,128)}', space=vmem, size = 0x12000, scoped, tag = 'internal scratch']
  #allocation2 [shape = 'f32[2,16,128]{2,1,0:T(8,128)}', space=vmem, size = 0x4000, scoped, tag = 'scratch operand']
  #allocation3 [shape = 's32[2]{0}', space=sflag, size = 0x8, scoped, tag = 'scratch operand']
  #allocation4 [shape = 's32[1]{0}', space=sflag, size = 0x4, scoped, tag = 'scoped memory for tpu_custom_call.1']
  #allocation5 [shape = 'u8[512]{0}', space=smem, size = 0x200, scoped, tag = 'prefetched SMEM operand 0']
  #allocation10 [shape = 's32[]', space=sflag, size = 0x4, offset = 0, fixed_abs, tag = 'sflag constant byte address 0x0 - dummy sync flag']
  #allocation11 [shape = 's32[]', space=sflag, size = 0x4, offset = 0, fixed_abs, tag = 'sflag constant byte address 0x0 - dummy sync flag']
  #allocation12 [shape = 'u32[]', space=smem, size = 0x4, offset = 0x44, fixed_abs, tag = 'smem constant byte address 0x44 - assertion arg 0']
  #allocation13 [shape = 'u32[]', space=smem, size = 0x4, offset = 0x48, fixed_abs, tag = 'smem constant byte address 0x48 - assertion arg 1']
  #allocation14 [shape = 's32[]', space=sflag, size = 0x4, offset = 0, fixed_abs, tag = 'sflag constant byte address 0x0 - dummy sync flag']
  #allocation15 [shape = 's32[]', space=sflag, size = 0x4, offset = 0, fixed_abs, tag = 'sflag constant byte address 0x0 - dummy sync flag']
  #allocation16 [shape = 's32[]', space=sflag, size = 0x4, offset = 0, fixed_abs, tag = 'sflag constant byte address 0x0 - dummy sync flag']
  #allocation17 [shape = 's32[]', space=sflag, size = 0x4, offset = 0, fixed_abs, tag = 'sflag constant byte address 0x0 - dummy sync flag']
  #allocation18 [shape = 's32[]', space=sflag, size = 0x4, offset = 0, fixed_abs, tag = 'sflag constant byte address 0x0 - dummy sync flag']
  #allocation19 [shape = 's32[]', space=sflag, size = 0x4, offset = 0, fixed_abs, tag = 'sflag constant byte address 0x0 - dummy sync flag']
  #allocation20 [shape = 's32[]', space=sflag, size = 0x4, offset = 0, fixed_abs, tag = 'sflag constant byte address 0x0 - dummy sync flag']
  #allocation21 [shape = 's32[]', space=sflag, size = 0x4, offset = 0, fixed_abs, tag = 'sflag constant byte address 0x0 - dummy sync flag']
  #allocation22 [shape = 's32[]', space=sflag, size = 0x4, offset = 0, fixed_abs, tag = 'sflag constant byte address 0x0 - dummy sync flag']
  #allocation23 [shape = 's32[]', space=sflag, size = 0x4, offset = 0, fixed_abs, tag = 'sflag constant byte address 0x0 - dummy sync flag']
  #allocation24 [shape = 's32[]', space=sflag, size = 0x4, offset = 0, fixed_abs, tag = 'sflag constant byte address 0x0 - dummy sync flag']
  #allocation25 [shape = 's32[]', space=sflag, size = 0x4, offset = 0, fixed_abs, tag = 'sflag constant byte address 0x0 - dummy sync flag']
  #allocation26 [shape = 's32[]', space=sflag, size = 0x4, offset = 0, fixed_abs, tag = 'sflag constant byte address 0x0 - dummy sync flag']
  #allocation27 [shape = 's32[]', space=sflag, size = 0x4, offset = 0, fixed_abs, tag = 'sflag constant byte address 0x0 - dummy sync flag']
  #allocation28 [shape = 's32[]', space=sflag, size = 0x4, offset = 0, fixed_abs, tag = 'sflag constant byte address 0x0 - dummy sync flag']
  #allocation29 [shape = 's32[]', space=sflag, size = 0x4, offset = 0, fixed_abs, tag = 'sflag constant byte address 0x0 - dummy sync flag']
  #allocation30 [shape = 's32[]', space=sflag, size = 0x4, offset = 0, fixed_abs, tag = 'sflag constant byte address 0x0 - dummy sync flag']
  #allocation31 [shape = 's32[]', space=sflag, size = 0x4, offset = 0, fixed_abs, tag = 'sflag constant byte address 0x0 - dummy sync flag']
  #allocation32 [shape = 's32[]', space=sflag, size = 0x4, offset = 0, fixed_abs, tag = 'sflag constant byte address 0x0 - dummy sync flag']
  #allocation33 [shape = 's32[]', space=sflag, size = 0x4, offset = 0, fixed_abs, tag = 'sflag constant byte address 0x0 - dummy sync flag']
  #allocation34 [shape = 's32[]', space=sflag, size = 0x4, offset = 0, fixed_abs, tag = 'sflag constant byte address 0x0 - dummy sync flag']
  #allocation35 [shape = 's32[]', space=sflag, size = 0x4, offset = 0, fixed_abs, tag = 'sflag constant byte address 0x0 - dummy sync flag']
  #allocation36 [shape = 's32[]', space=sflag, size = 0x4, offset = 0, fixed_abs, tag = 'sflag constant byte address 0x0 - dummy sync flag']
  #allocation37 [shape = 's32[]', space=sflag, size = 0x4, offset = 0, fixed_abs, tag = 'sflag constant byte address 0x0 - dummy sync flag']
  #allocation38 [shape = 's32[]', space=sflag, size = 0x4, offset = 0, fixed_abs, tag = 'sflag constant byte address 0x0 - dummy sync flag']
  #allocation39 [shape = 's32[]', space=sflag, size = 0x4, offset = 0, fixed_abs, tag = 'sflag constant byte address 0x0 - dummy sync flag']
  #allocation40 [shape = 's32[]', space=sflag, size = 0x4, offset = 0, fixed_abs, tag = 'sflag constant byte address 0x0 - dummy sync flag']
  #allocation41 [shape = 's32[]', space=sflag, size = 0x4, offset = 0, fixed_abs, tag = 'sflag constant byte address 0x0 - dummy sync flag']
  #allocation42 [shape = 's32[]', space=sflag, size = 0x4, offset = 0, fixed_abs, tag = 'sflag constant byte address 0x0 - dummy sync flag']
  #allocation43 [shape = 's32[]', space=sflag, size = 0x4, offset = 0, fixed_abs, tag = 'sflag constant byte address 0x0 - dummy sync flag']
  #allocation44 [shape = 's32[]', space=sflag, size = 0x4, offset = 0, fixed_abs, tag = 'sflag constant byte address 0x0 - dummy sync flag']
  #allocation45 [shape = 's32[]', space=sflag, size = 0x4, offset = 0, fixed_abs, tag = 'sflag constant byte address 0x0 - dummy sync flag']
  #allocation46 [shape = 's32[]', space=sflag, size = 0x4, offset = 0, fixed_abs, tag = 'sflag constant byte address 0x0 - dummy sync flag']
  #allocation47 [shape = 's32[]', space=sflag, size = 0x4, offset = 0, fixed_abs, tag = 'sflag constant byte address 0x0 - dummy sync flag']
  #allocation48 [shape = 's32[]', space=sflag, size = 0x4, offset = 0, fixed_abs, tag = 'sflag constant byte address 0x0 - dummy sync flag']
  #allocation49 [shape = 's32[]', space=sflag, size = 0x4, offset = 0, fixed_abs, tag = 'sflag constant byte address 0x0 - dummy sync flag']
  #allocation50 [shape = 's32[]', space=sflag, size = 0x4, offset = 0, fixed_abs, tag = 'sflag constant byte address 0x0 - dummy sync flag']
  #allocation51 [shape = 's32[]', space=sflag, size = 0x4, offset = 0, fixed_abs, tag = 'sflag constant byte address 0x0 - dummy sync flag']
  #allocation52 [shape = 's32[]', space=sflag, size = 0x4, offset = 0, fixed_abs, tag = 'sflag constant byte address 0x0 - dummy sync flag']
  #allocation53 [shape = 's32[]', space=sflag, size = 0x4, offset = 0, fixed_abs, tag = 'sflag constant byte address 0x0 - dummy sync flag']
  #allocation54 [shape = 's32[]', space=sflag, size = 0x4, offset = 0, fixed_abs, tag = 'sflag constant byte address 0x0 - dummy sync flag']
  #allocation55 [shape = 's32[]', space=sflag, size = 0x4, offset = 0, fixed_abs, tag = 'sflag constant byte address 0x0 - dummy sync flag']
  #allocation56 [shape = 's32[]', space=sflag, size = 0x4, offset = 0, fixed_abs, tag = 'sflag constant byte address 0x0 - dummy sync flag']
  #allocation57 [shape = 's32[]', space=sflag, size = 0x4, offset = 0, fixed_abs, tag = 'sflag constant byte address 0x0 - dummy sync flag']
  #allocation58 [shape = 's32[]', space=sflag, size = 0x4, offset = 0, fixed_abs, tag = 'sflag constant byte address 0x0 - dummy sync flag']
  #allocation59 [shape = 's32[]', space=sflag, size = 0x4, offset = 0, fixed_abs, tag = 'sflag constant byte address 0x0 - dummy sync flag']
  #allocation60 [shape = 's32[]', space=sflag, size = 0x4, offset = 0, fixed_abs, tag = 'sflag constant byte address 0x0 - dummy sync flag']
  #allocation61 [shape = 's32[]', space=sflag, size = 0x4, offset = 0, fixed_abs, tag = 'sflag constant byte address 0x0 - dummy sync flag']
  #allocation62 [shape = 's32[]', space=sflag, size = 0x4, offset = 0, fixed_abs, tag = 'sflag constant byte address 0x0 - dummy sync flag']
  #allocation63 [shape = 's32[]', space=sflag, size = 0x4, offset = 0, fixed_abs, tag = 'sflag constant byte address 0x0 - dummy sync flag']
  #allocation64 [shape = 's32[]', space=sflag, size = 0x4, offset = 0, fixed_abs, tag = 'sflag constant byte address 0x0 - dummy sync flag']
  #allocation65 [shape = 's32[]', space=sflag, size = 0x4, offset = 0, fixed_abs, tag = 'sflag constant byte address 0x0 - dummy sync flag']
  #allocation66 [shape = 's32[]', space=sflag, size = 0x4, offset = 0, fixed_abs, tag = 'sflag constant byte address 0x0 - dummy sync flag']
  #allocation67 [shape = 's32[]', space=sflag, size = 0x4, offset = 0, fixed_abs, tag = 'sflag constant byte address 0x0 - dummy sync flag']
  #allocation68 [shape = 's32[]', space=sflag, size = 0x4, offset = 0, fixed_abs, tag = 'sflag constant byte address 0x0 - dummy sync flag']
  #allocation69 [shape = 's32[]', space=sflag, size = 0x4, offset = 0, fixed_abs, tag = 'sflag constant byte address 0x0 - dummy sync flag']
  #allocation70 [shape = 's32[]', space=sflag, size = 0x4, offset = 0, fixed_abs, tag = 'sflag constant byte address 0x0 - dummy sync flag']
  #allocation71 [shape = 's32[]', space=sflag, size = 0x4, offset = 0, fixed_abs, tag = 'sflag constant byte address 0x0 - dummy sync flag']
  #allocation72 [shape = 's32[]', space=sflag, size = 0x4, offset = 0, fixed_abs, tag = 'sflag constant byte address 0x0 - dummy sync flag']
  #allocation73 [shape = 's32[]', space=sflag, size = 0x4, offset = 0, fixed_abs, tag = 'sflag constant byte address 0x0 - dummy sync flag']
  #allocation74 [shape = 's32[]', space=sflag, size = 0x4, offset = 0, fixed_abs, tag = 'sflag constant byte address 0x0 - dummy sync flag']
  #allocation75 [shape = 's32[]', space=sflag, size = 0x4, offset = 0, fixed_abs, tag = 'sflag constant byte address 0x0 - dummy sync flag']
  %s0 = inlined_call_operand.vmem [shape: s32[1,16], index: 0, kind: input, shape index: {}]
  %s1 = inlined_call_operand.vmem [shape: f32[16,1], index: 1, kind: input, shape index: {}]
  %s2 = inlined_call_operand.vmem [shape: s32[16,1], index: 2, kind: input, shape index: {}]
  %s3 = inlined_call_operand.vmem [shape: bf16[16,128], index: 3, kind: input, shape index: {}]
  %s4 = inlined_call_operand.vmem [shape: f32[1,128], index: 4, kind: input, shape index: {}]
  %s5 = inlined_call_operand.vmem [shape: f32[1,128], index: 5, kind: input, shape index: {}]
  %s6 = inlined_call_operand.vmem [shape: bf16[8,128], index: 6, kind: input, shape index: {}]
  %s7 = inlined_call_operand.hbm [shape: f32[128,128], index: 7, kind: input, shape index: {}]
  %s8 = inlined_call_operand.hbm [shape: f32[16,128], index: 8, kind: output, shape index: {0}]
  %s9 = inlined_call_operand.hbm [shape: f32[2,1,128], index: 9, kind: output, shape index: {1}]
  %10 = xla_tuple %s8, %s9
  %s11 = sld [smem:[#allocation0]]
  $region178: #{tpu_custom_call.1} parent=0
    _
  %s13 = ssub.s32 1, %s11
  %s14 = scalar_select 0, %s13, %s11
  %s15 = sshll.u32 %s0, 4
  %s16 = int_to_ptr.vmem [resolvable:$true] %s15
  %18 = dma.vmem_to_smem %s16, 16, [#allocation5], [#allocation4]
  %19 = dma.done [#allocation4], 16
  %20 = sfence
  $region1: #{tpu_custom_call.1} parent=0
    #allocation6 [shape = 'u8[8192]{0}', space=vmem, size = 0x2000, scoped, tag = 'output window, operand 0, single buffered']
    #allocation7 [shape = 's32[1]{0}', space=sflag, size = 0x4, scoped, tag = 'scoped memory for tpu_custom_call.1']
    #allocation8 [shape = 'u8[1024]{0}', space=vmem, size = 0x400, scoped, tag = 'output window, operand 1, single buffered']
    #allocation9 [shape = 's32[1]{0}', space=sflag, size = 0x4, scoped, tag = 'scoped memory for tpu_custom_call.1']
    %21 = vsyncpa [#allocation7], 0
    %22 = vsyncpa [#allocation9], 0
    // Predicated region
    $region2: #{tpu_custom_call.1} parent=1 // pred_check
      _
    $region3: #{tpu_custom_call.1} parent=1 // pred_check_branch
      %24 = sbr.rel (0) target = $region5
    $region4: #{tpu_custom_call.1} parent=1 // pred_region
      %s25 = sadd.s32 0, 0
      %s26 = smul.u32 2, %s25
      %p27 = scmp.lt.s32.totalorder %s26, 1
      %s28 = scalar_select %p27, %s26, 1
      %s29 = smul.addr %s28, 8
      %s30 = scalar_lea.vmem %s1, %s29
      %s31 = sadd.s32 0, 0
      %s32 = smul.u32 2, %s31
    $region5: #{tpu_custom_call.1} parent=1 // pred_fallthru
      _
    // Predicated region
    $region6: #{tpu_custom_call.1} parent=1 // pred_check
      _
    $region7: #{tpu_custom_call.1} parent=1 // pred_check_branch
      %34 = sbr.rel (0) target = $region9
    $region8: #{tpu_custom_call.1} parent=1 // pred_region
      %s35 = sadd.s32 0, 0
      %s36 = smul.u32 2, %s35
      %p37 = scmp.lt.s32.totalorder %s36, 1
      %s38 = scalar_select %p37, %s36, 1
      %s39 = smul.addr %s38, 8
      %s40 = scalar_lea.vmem %s2, %s39
      %s41 = sadd.s32 0, 0
      %s42 = smul.u32 2, %s41
    $region9: #{tpu_custom_call.1} parent=1 // pred_fallthru
      _
    // Predicated region
    $region10: #{tpu_custom_call.1} parent=1 // pred_check
      _
    $region11: #{tpu_custom_call.1} parent=1 // pred_check_branch
      %44 = sbr.rel (0) target = $region13
    $region12: #{tpu_custom_call.1} parent=1 // pred_region
      _
    $region13: #{tpu_custom_call.1} parent=1 // pred_fallthru
      _
    // Predicated region
    $region14: #{tpu_custom_call.1} parent=1 // pred_check
      _
    $region15: #{tpu_custom_call.1} parent=1 // pred_check_branch
      %46 = sbr.rel (0) target = $region17
    $region16: #{tpu_custom_call.1} parent=1 // pred_region
      _
    $region17: #{tpu_custom_call.1} parent=1 // pred_fallthru
      _
    // Predicated region
    $region18: #{tpu_custom_call.1} parent=1 // pred_check
      _
    $region19: #{tpu_custom_call.1} parent=1 // pred_check_branch
      %48 = sbr.rel (0) target = $region21
    $region20: #{tpu_custom_call.1} parent=1 // pred_region
      _
    $region21: #{tpu_custom_call.1} parent=1 // pred_fallthru
      _
    // Predicated region
    $region22: #{tpu_custom_call.1} parent=1 // pred_check
      _
    $region23: #{tpu_custom_call.1} parent=1 // pred_check_branch
      %50 = sbr.rel (0) target = $region25
    $region24: #{tpu_custom_call.1} parent=1 // pred_region
      _
    $region25: #{tpu_custom_call.1} parent=1 // pred_fallthru
      _
    %s51 = sadd.s32 0, 0
    %s52 = smul.u32 2, %s51
    %p53 = scmp.lt.s32.totalorder %s52, 1
    %s54 = scalar_select %p53, %s52, 1
    %s55 = smul.addr %s54, 8
    %s56 = scalar_lea.vmem %s1, %s55
    %s57 = sadd.s32 0, 0
    %s58 = smul.u32 2, %s57
    %p59 = scmp.lt.s32.totalorder %s58, 1
    %s60 = scalar_select %p59, %s58, 1
    %s61 = smul.addr %s60, 8
    %s62 = scalar_lea.vmem %s2, %s61
    %s63 = sadd.s32 0, 0
    %s64 = smul.u32 2, %s63
    %p65 = scmp.lt.s32.totalorder %s64, 1
    %s66 = scalar_select %p65, %s64, 1
    %s67 = smul.addr %s66, 8
    %s68 = scalar_lea.vmem %s1, %s67
    %s69 = sadd.s32 0, 0
    %s70 = smul.u32 2, %s69
    %s71 = sadd.s32 0, 0
    %s72 = smul.u32 2, %s71
    %p73 = scmp.lt.s32.totalorder %s72, 1
    %s74 = scalar_select %p73, %s72, 1
    %s75 = smul.addr %s74, 8
    %s76 = scalar_lea.vmem %s2, %s75
    %s77 = sadd.s32 0, 0
    %s78 = smul.u32 2, %s77
    %s79 = sadd.s32 0, 0
    %s80 = smul.u32 2, %s79
    %s81 = sadd.s32 0, 0
    %s82 = smul.u32 2, %s81
    %s83 = sadd.s32 0, 0
    %s84 = ssub.s32 0, 0
    %s85 = ssub.s32 0, 0
    %p86 = scmp.ne.s32.totalorder 0, 0
    %p87 = scmp.lt.s32.totalorder 0, 0
    %p88 = pnand %p87, %p86
    %p89 = pneg %p88
    %s90 = sadd.s32 0, 2
    %s91 = scalar_select %p89, %s90, 0
    %p92 = scmp.eq.s32.totalorder 0, 0
    // Predicated region
    $region26: #{tpu_custom_call.1} parent=1 // pred_check
      %p93 = pneg %p92
    $region27: #{tpu_custom_call.1} parent=1 // pred_check_branch
      %95 = sbr.rel (%p93) target = $region29
    $region28: #{tpu_custom_call.1} parent=1 // pred_region
      %s96 = smul.u32 %s83, 128
      %s97 = sld [smem:[#allocation5 + %s96]]
      %s98 = smul.addr %s97, 16
      %s99 = scalar_lea.hbm %s7, %s98
      %s100 = smul.u32 %s91, 16
      %s101 = scalar_lea.vmem [#allocation2], %s100
      %s102 = scalar_lea.sflag [#allocation3], %s91
      // Predicated region
      $region30: #{tpu_custom_call.1} parent=28 // pred_check
        _
      $region31: #{tpu_custom_call.1} parent=28 // pred_check_branch
        %104 = sbr.rel target = $region33
      $region32: #{tpu_custom_call.1} parent=28 // pred_region
        %105 = sst [smem:[#allocation12]] [#allocation11]
        %106 = sst [smem:[#allocation13]] [#allocation10]
      $region33: #{tpu_custom_call.1} parent=28 // pred_fallthru
        _
      %108 = shalt.err (0)
      %s110 = sshll.u32 %s101, 4
      %s111 = int_to_ptr.vmem [resolvable:$true] %s110
      %113 = dma.hbm_to_vmem [thread:$0]  %s99, 16, %s111, %s102
      %s114 = sadd.s32 %s96, 1
      %s115 = sld [smem:[#allocation5 + %s114]]
      %s116 = smul.addr %s115, 16
      %s117 = scalar_lea.hbm %s7, %s116
      %s118 = sadd.s32 1, %s100
      %s119 = scalar_lea.vmem [#allocation2], %s118
      // Predicated region
      $region34: #{tpu_custom_call.1} parent=28 // pred_check
        _
      $region35: #{tpu_custom_call.1} parent=28 // pred_check_branch
        %121 = sbr.rel target = $region37
      $region36: #{tpu_custom_call.1} parent=28 // pred_region
        %122 = sst [smem:[#allocation12]] [#allocation15]
        %123 = sst [smem:[#allocation13]] [#allocation14]
      $region37: #{tpu_custom_call.1} parent=28 // pred_fallthru
        _
      %125 = shalt.err (0)
      %s127 = sshll.u32 %s119, 4
      %s128 = int_to_ptr.vmem [resolvable:$true] %s127
      %130 = dma.hbm_to_vmem [thread:$0]  %s117, 16, %s128, %s102
      %s131 = sadd.s32 %s96, 2
      %s132 = sld [smem:[#allocation5 + %s131]]
      %s133 = smul.addr %s132, 16
      %s134 = scalar_lea.hbm %s7, %s133
      %s135 = sadd.s32 2, %s100
      %s136 = scalar_lea.vmem [#allocation2], %s135
      // Predicated region
      $region38: #{tpu_custom_call.1} parent=28 // pred_check
        _
      $region39: #{tpu_custom_call.1} parent=28 // pred_check_branch
        %138 = sbr.rel target = $region41
      $region40: #{tpu_custom_call.1} parent=28 // pred_region
        %139 = sst [smem:[#allocation12]] [#allocation17]
        %140 = sst [smem:[#allocation13]] [#allocation16]
      $region41: #{tpu_custom_call.1} parent=28 // pred_fallthru
        _
      %142 = shalt.err (0)
      %s144 = sshll.u32 %s136, 4
      %s145 = int_to_ptr.vmem [resolvable:$true] %s144
      %147 = dma.hbm_to_vmem [thread:$0]  %s134, 16, %s145, %s102
      %s148 = sadd.s32 %s96, 3
      %s149 = sld [smem:[#allocation5 + %s148]]
      %s150 = smul.addr %s149, 16
      %s151 = scalar_lea.hbm %s7, %s150
      %s152 = sadd.s32 3, %s100
      %s153 = scalar_lea.vmem [#allocation2], %s152
      // Predicated region
      $region42: #{tpu_custom_call.1} parent=28 // pred_check
        _
      $region43: #{tpu_custom_call.1} parent=28 // pred_check_branch
        %155 = sbr.rel target = $region45
      $region44: #{tpu_custom_call.1} parent=28 // pred_region
        %156 = sst [smem:[#allocation12]] [#allocation19]
        %157 = sst [smem:[#allocation13]] [#allocation18]
      $region45: #{tpu_custom_call.1} parent=28 // pred_fallthru
        _
      %159 = shalt.err (0)
      %s161 = sshll.u32 %s153, 4
      %s162 = int_to_ptr.vmem [resolvable:$true] %s161
      %164 = dma.hbm_to_vmem [thread:$0]  %s151, 16, %s162, %s102
      %s165 = sadd.s32 %s96, 4
      %s166 = sld [smem:[#allocation5 + %s165]]
      %s167 = smul.addr %s166, 16
      %s168 = scalar_lea.hbm %s7, %s167
      %s169 = sadd.s32 4, %s100
      %s170 = scalar_lea.vmem [#allocation2], %s169
      // Predicated region
      $region46: #{tpu_custom_call.1} parent=28 // pred_check
        _
      $region47: #{tpu_custom_call.1} parent=28 // pred_check_branch
        %172 = sbr.rel target = $region49
      $region48: #{tpu_custom_call.1} parent=28 // pred_region
        %173 = sst [smem:[#allocation12]] [#allocation21]
        %174 = sst [smem:[#allocation13]] [#allocation20]
      $region49: #{tpu_custom_call.1} parent=28 // pred_fallthru
        _
      %176 = shalt.err (0)
      %s178 = sshll.u32 %s170, 4
      %s179 = int_to_ptr.vmem [resolvable:$true] %s178
      %181 = dma.hbm_to_vmem [thread:$0]  %s168, 16, %s179, %s102
      %s182 = sadd.s32 %s96, 5
      %s183 = sld [smem:[#allocation5 + %s182]]
      %s184 = smul.addr %s183, 16
      %s185 = scalar_lea.hbm %s7, %s184
      %s186 = sadd.s32 5, %s100
      %s187 = scalar_lea.vmem [#allocation2], %s186
      // Predicated region
      $region50: #{tpu_custom_call.1} parent=28 // pred_check
        _
      $region51: #{tpu_custom_call.1} parent=28 // pred_check_branch
        %189 = sbr.rel target = $region53
      $region52: #{tpu_custom_call.1} parent=28 // pred_region
        %190 = sst [smem:[#allocation12]] [#allocation23]
        %191 = sst [smem:[#allocation13]] [#allocation22]
      $region53: #{tpu_custom_call.1} parent=28 // pred_fallthru
        _
      %193 = shalt.err (0)
      %s195 = sshll.u32 %s187, 4
      %s196 = int_to_ptr.vmem [resolvable:$true] %s195
      %198 = dma.hbm_to_vmem [thread:$0]  %s185, 16, %s196, %s102
      %s199 = sadd.s32 %s96, 6
      %s200 = sld [smem:[#allocation5 + %s199]]
      %s201 = smul.addr %s200, 16
      %s202 = scalar_lea.hbm %s7, %s201
      %s203 = sadd.s32 6, %s100
      %s204 = scalar_lea.vmem [#allocation2], %s203
      // Predicated region
      $region54: #{tpu_custom_call.1} parent=28 // pred_check
        _
      $region55: #{tpu_custom_call.1} parent=28 // pred_check_branch
        %206 = sbr.rel target = $region57
      $region56: #{tpu_custom_call.1} parent=28 // pred_region
        %207 = sst [smem:[#allocation12]] [#allocation25]
        %208 = sst [smem:[#allocation13]] [#allocation24]
      $region57: #{tpu_custom_call.1} parent=28 // pred_fallthru
        _
      %210 = shalt.err (0)
      %s212 = sshll.u32 %s204, 4
      %s213 = int_to_ptr.vmem [resolvable:$true] %s212
      %215 = dma.hbm_to_vmem [thread:$0]  %s202, 16, %s213, %s102
      %s216 = sadd.s32 %s96, 7
      %s217 = sld [smem:[#allocation5 + %s216]]
      %s218 = smul.addr %s217, 16
      %s219 = scalar_lea.hbm %s7, %s218
      %s220 = sadd.s32 7, %s100
      %s221 = scalar_lea.vmem [#allocation2], %s220
      // Predicated region
      $region58: #{tpu_custom_call.1} parent=28 // pred_check
        _
      $region59: #{tpu_custom_call.1} parent=28 // pred_check_branch
        %223 = sbr.rel target = $region61
      $region60: #{tpu_custom_call.1} parent=28 // pred_region
        %224 = sst [smem:[#allocation12]] [#allocation27]
        %225 = sst [smem:[#allocation13]] [#allocation26]
      $region61: #{tpu_custom_call.1} parent=28 // pred_fallthru
        _
      %227 = shalt.err (0)
      %s229 = sshll.u32 %s221, 4
      %s230 = int_to_ptr.vmem [resolvable:$true] %s229
      %232 = dma.hbm_to_vmem [thread:$0]  %s219, 16, %s230, %s102
      %s233 = sadd.s32 %s96, 8
      %s234 = sld [smem:[#allocation5 + %s233]]
      %s235 = smul.addr %s234, 16
      %s236 = scalar_lea.hbm %s7, %s235
      %s237 = sadd.s32 8, %s100
      %s238 = scalar_lea.vmem [#allocation2], %s237
      // Predicated region
      $region62: #{tpu_custom_call.1} parent=28 // pred_check
        _
      $region63: #{tpu_custom_call.1} parent=28 // pred_check_branch
        %240 = sbr.rel target = $region65
      $region64: #{tpu_custom_call.1} parent=28 // pred_region
        %241 = sst [smem:[#allocation12]] [#allocation29]
        %242 = sst [smem:[#allocation13]] [#allocation28]
      $region65: #{tpu_custom_call.1} parent=28 // pred_fallthru
        _
      %244 = shalt.err (0)
      %s246 = sshll.u32 %s238, 4
      %s247 = int_to_ptr.vmem [resolvable:$true] %s246
      %249 = dma.hbm_to_vmem [thread:$0]  %s236, 16, %s247, %s102
      %s250 = sadd.s32 %s96, 9
      %s251 = sld [smem:[#allocation5 + %s250]]
      %s252 = smul.addr %s251, 16
      %s253 = scalar_lea.hbm %s7, %s252
      %s254 = sadd.s32 9, %s100
      %s255 = scalar_lea.vmem [#allocation2], %s254
      // Predicated region
      $region66: #{tpu_custom_call.1} parent=28 // pred_check
        _
      $region67: #{tpu_custom_call.1} parent=28 // pred_check_branch
        %257 = sbr.rel target = $region69
      $region68: #{tpu_custom_call.1} parent=28 // pred_region
        %258 = sst [smem:[#allocation12]] [#allocation31]
        %259 = sst [smem:[#allocation13]] [#allocation30]
      $region69: #{tpu_custom_call.1} parent=28 // pred_fallthru
        _
      %261 = shalt.err (0)
      %s263 = sshll.u32 %s255, 4
      %s264 = int_to_ptr.vmem [resolvable:$true] %s263
      %266 = dma.hbm_to_vmem [thread:$0]  %s253, 16, %s264, %s102
      %s267 = sadd.s32 %s96, 10
      %s268 = sld [smem:[#allocation5 + %s267]]
      %s269 = smul.addr %s268, 16
      %s270 = scalar_lea.hbm %s7, %s269
      %s271 = sadd.s32 10, %s100
      %s272 = scalar_lea.vmem [#allocation2], %s271
      // Predicated region
      $region70: #{tpu_custom_call.1} parent=28 // pred_check
        _
      $region71: #{tpu_custom_call.1} parent=28 // pred_check_branch
        %274 = sbr.rel target = $region73
      $region72: #{tpu_custom_call.1} parent=28 // pred_region
        %275 = sst [smem:[#allocation12]] [#allocation33]
        %276 = sst [smem:[#allocation13]] [#allocation32]
      $region73: #{tpu_custom_call.1} parent=28 // pred_fallthru
        _
      %278 = shalt.err (0)
      %s280 = sshll.u32 %s272, 4
      %s281 = int_to_ptr.vmem [resolvable:$true] %s280
      %283 = dma.hbm_to_vmem [thread:$0]  %s270, 16, %s281, %s102
      %s284 = sadd.s32 %s96, 11
      %s285 = sld [smem:[#allocation5 + %s284]]
      %s286 = smul.addr %s285, 16
      %s287 = scalar_lea.hbm %s7, %s286
      %s288 = sadd.s32 11, %s100
      %s289 = scalar_lea.vmem [#allocation2], %s288
      // Predicated region
      $region74: #{tpu_custom_call.1} parent=28 // pred_check
        _
      $region75: #{tpu_custom_call.1} parent=28 // pred_check_branch
        %291 = sbr.rel target = $region77
      $region76: #{tpu_custom_call.1} parent=28 // pred_region
        %292 = sst [smem:[#allocation12]] [#allocation35]
        %293 = sst [smem:[#allocation13]] [#allocation34]
      $region77: #{tpu_custom_call.1} parent=28 // pred_fallthru
        _
      %295 = shalt.err (0)
      %s297 = sshll.u32 %s289, 4
      %s298 = int_to_ptr.vmem [resolvable:$true] %s297
      %300 = dma.hbm_to_vmem [thread:$0]  %s287, 16, %s298, %s102
      %s301 = sadd.s32 %s96, 12
      %s302 = sld [smem:[#allocation5 + %s301]]
      %s303 = smul.addr %s302, 16
      %s304 = scalar_lea.hbm %s7, %s303
      %s305 = sadd.s32 12, %s100
      %s306 = scalar_lea.vmem [#allocation2], %s305
      // Predicated region
      $region78: #{tpu_custom_call.1} parent=28 // pred_check
        _
      $region79: #{tpu_custom_call.1} parent=28 // pred_check_branch
        %308 = sbr.rel target = $region81
      $region80: #{tpu_custom_call.1} parent=28 // pred_region
        %309 = sst [smem:[#allocation12]] [#allocation37]
        %310 = sst [smem:[#allocation13]] [#allocation36]
      $region81: #{tpu_custom_call.1} parent=28 // pred_fallthru
        _
      %312 = shalt.err (0)
      %s314 = sshll.u32 %s306, 4
      %s315 = int_to_ptr.vmem [resolvable:$true] %s314
      %317 = dma.hbm_to_vmem [thread:$0]  %s304, 16, %s315, %s102
      %s318 = sadd.s32 %s96, 13
      %s319 = sld [smem:[#allocation5 + %s318]]
      %s320 = smul.addr %s319, 16
      %s321 = scalar_lea.hbm %s7, %s320
      %s322 = sadd.s32 13, %s100
      %s323 = scalar_lea.vmem [#allocation2], %s322
      // Predicated region
      $region82: #{tpu_custom_call.1} parent=28 // pred_check
        _
      $region83: #{tpu_custom_call.1} parent=28 // pred_check_branch
        %325 = sbr.rel target = $region85
      $region84: #{tpu_custom_call.1} parent=28 // pred_region
        %326 = sst [smem:[#allocation12]] [#allocation39]
        %327 = sst [smem:[#allocation13]] [#allocation38]
      $region85: #{tpu_custom_call.1} parent=28 // pred_fallthru
        _
      %329 = shalt.err (0)
      %s331 = sshll.u32 %s323, 4
      %s332 = int_to_ptr.vmem [resolvable:$true] %s331
      %334 = dma.hbm_to_vmem [thread:$0]  %s321, 16, %s332, %s102
      %s335 = sadd.s32 %s96, 14
      %s336 = sld [smem:[#allocation5 + %s335]]
      %s337 = smul.addr %s336, 16
      %s338 = scalar_lea.hbm %s7, %s337
      %s339 = sadd.s32 14, %s100
      %s340 = scalar_lea.vmem [#allocation2], %s339
      // Predicated region
      $region86: #{tpu_custom_call.1} parent=28 // pred_check
        _
      $region87: #{tpu_custom_call.1} parent=28 // pred_check_branch
        %342 = sbr.rel target = $region89
      $region88: #{tpu_custom_call.1} parent=28 // pred_region
        %343 = sst [smem:[#allocation12]] [#allocation41]
        %344 = sst [smem:[#allocation13]] [#allocation40]
      $region89: #{tpu_custom_call.1} parent=28 // pred_fallthru
        _
      %346 = shalt.err (0)
      %s348 = sshll.u32 %s340, 4
      %s349 = int_to_ptr.vmem [resolvable:$true] %s348
      %351 = dma.hbm_to_vmem [thread:$0]  %s338, 16, %s349, %s102
      %s352 = sadd.s32 %s96, 15
      %s353 = sld [smem:[#allocation5 + %s352]]
      %s354 = smul.addr %s353, 16
      %s355 = scalar_lea.hbm %s7, %s354
      %s356 = sadd.s32 15, %s100
      %s357 = scalar_lea.vmem [#allocation2], %s356
      // Predicated region
      $region90: #{tpu_custom_call.1} parent=28 // pred_check
        _
      $region91: #{tpu_custom_call.1} parent=28 // pred_check_branch
        %359 = sbr.rel target = $region93
      $region92: #{tpu_custom_call.1} parent=28 // pred_region
        %360 = sst [smem:[#allocation12]] [#allocation43]
        %361 = sst [smem:[#allocation13]] [#allocation42]
      $region93: #{tpu_custom_call.1} parent=28 // pred_fallthru
        _
      %363 = shalt.err (0)
      %s365 = sshll.u32 %s357, 4
      %s366 = int_to_ptr.vmem [resolvable:$true] %s365
      %368 = dma.hbm_to_vmem [thread:$0]  %s355, 16, %s366, %s102
    $region29: #{tpu_custom_call.1} parent=1 // pred_fallthru
      _
    %s369 = smul.u32 %s83, 128
    %s370 = sld [smem:[#allocation5 + %s369]]
    %s371 = scalar_lea.sflag [#allocation3], %s91
    %s372 = smul.u32 1, 1
    %s373 = sshll.u32 %s372, 4
    %374 = dma.done %s371, %s373
    %s375 = sadd.s32 %s369, 1
    %s376 = sld [smem:[#allocation5 + %s375]]
    %s377 = sshll.u32 %s372, 4
    %378 = dma.done %s371, %s377
    %s379 = sadd.s32 %s369, 2
    %s380 = sld [smem:[#allocation5 + %s379]]
    %s381 = sshll.u32 %s372, 4
    %382 = dma.done %s371, %s381
    %s383 = sadd.s32 %s369, 3
    %s384 = sld [smem:[#allocation5 + %s383]]
    %s385 = sshll.u32 %s372, 4
    %386 = dma.done %s371, %s385
    %s387 = sadd.s32 %s369, 4
    %s388 = sld [smem:[#allocation5 + %s387]]
    %s389 = sshll.u32 %s372, 4
    %390 = dma.done %s371, %s389
    %s391 = sadd.s32 %s369, 5
    %s392 = sld [smem:[#allocation5 + %s391]]
    %s393 = sshll.u32 %s372, 4
    %394 = dma.done %s371, %s393
    %s395 = sadd.s32 %s369, 6
    %s396 = sld [smem:[#allocation5 + %s395]]
    %s397 = sshll.u32 %s372, 4
    %398 = dma.done %s371, %s397
    %s399 = sadd.s32 %s369, 7
    %s400 = sld [smem:[#allocation5 + %s399]]
    %s401 = sshll.u32 %s372, 4
    %402 = dma.done %s371, %s401
    %s403 = sadd.s32 %s369, 8
    %s404 = sld [smem:[#allocation5 + %s403]]
    %s405 = sshll.u32 %s372, 4
    %406 = dma.done %s371, %s405
    %s407 = sadd.s32 %s369, 9
    %s408 = sld [smem:[#allocation5 + %s407]]
    %s409 = sshll.u32 %s372, 4
    %410 = dma.done %s371, %s409
    %s411 = sadd.s32 %s369, 10
    %s412 = sld [smem:[#allocation5 + %s411]]
    %s413 = sshll.u32 %s372, 4
    %414 = dma.done %s371, %s413
    %s415 = sadd.s32 %s369, 11
    %s416 = sld [smem:[#allocation5 + %s415]]
    %s417 = sshll.u32 %s372, 4
    %418 = dma.done %s371, %s417
    %s419 = sadd.s32 %s369, 12
    %s420 = sld [smem:[#allocation5 + %s419]]
    %s421 = sshll.u32 %s372, 4
    %422 = dma.done %s371, %s421
    %s423 = sadd.s32 %s369, 13
    %s424 = sld [smem:[#allocation5 + %s423]]
    %s425 = sshll.u32 %s372, 4
    %426 = dma.done %s371, %s425
    %s427 = sadd.s32 %s369, 14
    %s428 = sld [smem:[#allocation5 + %s427]]
    %s429 = sshll.u32 %s372, 4
    %430 = dma.done %s371, %s429
    %s431 = sadd.s32 %s369, 15
    %s432 = sld [smem:[#allocation5 + %s431]]
    %s433 = sshll.u32 %s372, 4
    %434 = dma.done %s371, %s433
    %s435 = sadd.s32 0, 1
    %p436 = scmp.lt.s32.totalorder %s435, 1
    // Predicated region
    $region94: #{tpu_custom_call.1} parent=1 // pred_check
      %p437 = pneg %p436
    $region95: #{tpu_custom_call.1} parent=1 // pred_check_branch
      %439 = sbr.rel (%p437) target = $region97
    $region96: #{tpu_custom_call.1} parent=1 // pred_region
      %s440 = sadd.s32 %s83, 1
      %s441 = ssub.s32 1, %s91
      %s442 = smul.u32 %s440, 128
      %s443 = sld [smem:[#allocation5 + %s442]]
      %s444 = smul.addr %s443, 16
      %s445 = scalar_lea.hbm %s7, %s444
      %s446 = smul.u32 %s441, 16
      %s447 = scalar_lea.vmem [#allocation2], %s446
      %s448 = scalar_lea.sflag [#allocation3], %s441
      // Predicated region
      $region98: #{tpu_custom_call.1} parent=96 // pred_check
        _
      $region99: #{tpu_custom_call.1} parent=96 // pred_check_branch
        %450 = sbr.rel target = $region101
      $region100: #{tpu_custom_call.1} parent=96 // pred_region
        %451 = sst [smem:[#allocation12]] [#allocation45]
        %452 = sst [smem:[#allocation13]] [#allocation44]
      $region101: #{tpu_custom_call.1} parent=96 // pred_fallthru
        _
      %454 = shalt.err (0)
      %s456 = sshll.u32 %s447, 4
      %s457 = int_to_ptr.vmem [resolvable:$true] %s456
      %459 = dma.hbm_to_vmem [thread:$0]  %s445, 16, %s457, %s448
      %s460 = sadd.s32 %s442, 1
      %s461 = sld [smem:[#allocation5 + %s460]]
      %s462 = smul.addr %s461, 16
      %s463 = scalar_lea.hbm %s7, %s462
      %s464 = sadd.s32 1, %s446
      %s465 = scalar_lea.vmem [#allocation2], %s464
      // Predicated region
      $region102: #{tpu_custom_call.1} parent=96 // pred_check
        _
      $region103: #{tpu_custom_call.1} parent=96 // pred_check_branch
        %467 = sbr.rel target = $region105
      $region104: #{tpu_custom_call.1} parent=96 // pred_region
        %468 = sst [smem:[#allocation12]] [#allocation47]
        %469 = sst [smem:[#allocation13]] [#allocation46]
      $region105: #{tpu_custom_call.1} parent=96 // pred_fallthru
        _
      %471 = shalt.err (0)
      %s473 = sshll.u32 %s465, 4
      %s474 = int_to_ptr.vmem [resolvable:$true] %s473
      %476 = dma.hbm_to_vmem [thread:$0]  %s463, 16, %s474, %s448
      %s477 = sadd.s32 %s442, 2
      %s478 = sld [smem:[#allocation5 + %s477]]
      %s479 = smul.addr %s478, 16
      %s480 = scalar_lea.hbm %s7, %s479
      %s481 = sadd.s32 2, %s446
      %s482 = scalar_lea.vmem [#allocation2], %s481
      // Predicated region
      $region106: #{tpu_custom_call.1} parent=96 // pred_check
        _
      $region107: #{tpu_custom_call.1} parent=96 // pred_check_branch
        %484 = sbr.rel target = $region109
      $region108: #{tpu_custom_call.1} parent=96 // pred_region
        %485 = sst [smem:[#allocation12]] [#allocation49]
        %486 = sst [smem:[#allocation13]] [#allocation48]
      $region109: #{tpu_custom_call.1} parent=96 // pred_fallthru
        _
      %488 = shalt.err (0)
      %s490 = sshll.u32 %s482, 4
      %s491 = int_to_ptr.vmem [resolvable:$true] %s490
      %493 = dma.hbm_to_vmem [thread:$0]  %s480, 16, %s491, %s448
      %s494 = sadd.s32 %s442, 3
      %s495 = sld [smem:[#allocation5 + %s494]]
      %s496 = smul.addr %s495, 16
      %s497 = scalar_lea.hbm %s7, %s496
      %s498 = sadd.s32 3, %s446
      %s499 = scalar_lea.vmem [#allocation2], %s498
      // Predicated region
      $region110: #{tpu_custom_call.1} parent=96 // pred_check
        _
      $region111: #{tpu_custom_call.1} parent=96 // pred_check_branch
        %501 = sbr.rel target = $region113
      $region112: #{tpu_custom_call.1} parent=96 // pred_region
        %502 = sst [smem:[#allocation12]] [#allocation51]
        %503 = sst [smem:[#allocation13]] [#allocation50]
      $region113: #{tpu_custom_call.1} parent=96 // pred_fallthru
        _
      %505 = shalt.err (0)
      %s507 = sshll.u32 %s499, 4
      %s508 = int_to_ptr.vmem [resolvable:$true] %s507
      %510 = dma.hbm_to_vmem [thread:$0]  %s497, 16, %s508, %s448
      %s511 = sadd.s32 %s442, 4
      %s512 = sld [smem:[#allocation5 + %s511]]
      %s513 = smul.addr %s512, 16
      %s514 = scalar_lea.hbm %s7, %s513
      %s515 = sadd.s32 4, %s446
      %s516 = scalar_lea.vmem [#allocation2], %s515
      // Predicated region
      $region114: #{tpu_custom_call.1} parent=96 // pred_check
        _
      $region115: #{tpu_custom_call.1} parent=96 // pred_check_branch
        %518 = sbr.rel target = $region117
      $region116: #{tpu_custom_call.1} parent=96 // pred_region
        %519 = sst [smem:[#allocation12]] [#allocation53]
        %520 = sst [smem:[#allocation13]] [#allocation52]
      $region117: #{tpu_custom_call.1} parent=96 // pred_fallthru
        _
      %522 = shalt.err (0)
      %s524 = sshll.u32 %s516, 4
      %s525 = int_to_ptr.vmem [resolvable:$true] %s524
      %527 = dma.hbm_to_vmem [thread:$0]  %s514, 16, %s525, %s448
      %s528 = sadd.s32 %s442, 5
      %s529 = sld [smem:[#allocation5 + %s528]]
      %s530 = smul.addr %s529, 16
      %s531 = scalar_lea.hbm %s7, %s530
      %s532 = sadd.s32 5, %s446
      %s533 = scalar_lea.vmem [#allocation2], %s532
      // Predicated region
      $region118: #{tpu_custom_call.1} parent=96 // pred_check
        _
      $region119: #{tpu_custom_call.1} parent=96 // pred_check_branch
        %535 = sbr.rel target = $region121
      $region120: #{tpu_custom_call.1} parent=96 // pred_region
        %536 = sst [smem:[#allocation12]] [#allocation55]
        %537 = sst [smem:[#allocation13]] [#allocation54]
      $region121: #{tpu_custom_call.1} parent=96 // pred_fallthru
        _
      %539 = shalt.err (0)
      %s541 = sshll.u32 %s533, 4
      %s542 = int_to_ptr.vmem [resolvable:$true] %s541
      %544 = dma.hbm_to_vmem [thread:$0]  %s531, 16, %s542, %s448
      %s545 = sadd.s32 %s442, 6
      %s546 = sld [smem:[#allocation5 + %s545]]
      %s547 = smul.addr %s546, 16
      %s548 = scalar_lea.hbm %s7, %s547
      %s549 = sadd.s32 6, %s446
      %s550 = scalar_lea.vmem [#allocation2], %s549
      // Predicated region
      $region122: #{tpu_custom_call.1} parent=96 // pred_check
        _
      $region123: #{tpu_custom_call.1} parent=96 // pred_check_branch
        %552 = sbr.rel target = $region125
      $region124: #{tpu_custom_call.1} parent=96 // pred_region
        %553 = sst [smem:[#allocation12]] [#allocation57]
        %554 = sst [smem:[#allocation13]] [#allocation56]
      $region125: #{tpu_custom_call.1} parent=96 // pred_fallthru
        _
      %556 = shalt.err (0)
      %s558 = sshll.u32 %s550, 4
      %s559 = int_to_ptr.vmem [resolvable:$true] %s558
      %561 = dma.hbm_to_vmem [thread:$0]  %s548, 16, %s559, %s448
      %s562 = sadd.s32 %s442, 7
      %s563 = sld [smem:[#allocation5 + %s562]]
      %s564 = smul.addr %s563, 16
      %s565 = scalar_lea.hbm %s7, %s564
      %s566 = sadd.s32 7, %s446
      %s567 = scalar_lea.vmem [#allocation2], %s566
      // Predicated region
      $region126: #{tpu_custom_call.1} parent=96 // pred_check
        _
      $region127: #{tpu_custom_call.1} parent=96 // pred_check_branch
        %569 = sbr.rel target = $region129
      $region128: #{tpu_custom_call.1} parent=96 // pred_region
        %570 = sst [smem:[#allocation12]] [#allocation59]
        %571 = sst [smem:[#allocation13]] [#allocation58]
      $region129: #{tpu_custom_call.1} parent=96 // pred_fallthru
        _
      %573 = shalt.err (0)
      %s575 = sshll.u32 %s567, 4
      %s576 = int_to_ptr.vmem [resolvable:$true] %s575
      %578 = dma.hbm_to_vmem [thread:$0]  %s565, 16, %s576, %s448
      %s579 = sadd.s32 %s442, 8
      %s580 = sld [smem:[#allocation5 + %s579]]
      %s581 = smul.addr %s580, 16
      %s582 = scalar_lea.hbm %s7, %s581
      %s583 = sadd.s32 8, %s446
      %s584 = scalar_lea.vmem [#allocation2], %s583
      // Predicated region
      $region130: #{tpu_custom_call.1} parent=96 // pred_check
        _
      $region131: #{tpu_custom_call.1} parent=96 // pred_check_branch
        %586 = sbr.rel target = $region133
      $region132: #{tpu_custom_call.1} parent=96 // pred_region
        %587 = sst [smem:[#allocation12]] [#allocation61]
        %588 = sst [smem:[#allocation13]] [#allocation60]
      $region133: #{tpu_custom_call.1} parent=96 // pred_fallthru
        _
      %590 = shalt.err (0)
      %s592 = sshll.u32 %s584, 4
      %s593 = int_to_ptr.vmem [resolvable:$true] %s592
      %595 = dma.hbm_to_vmem [thread:$0]  %s582, 16, %s593, %s448
      %s596 = sadd.s32 %s442, 9
      %s597 = sld [smem:[#allocation5 + %s596]]
      %s598 = smul.addr %s597, 16
      %s599 = scalar_lea.hbm %s7, %s598
      %s600 = sadd.s32 9, %s446
      %s601 = scalar_lea.vmem [#allocation2], %s600
      // Predicated region
      $region134: #{tpu_custom_call.1} parent=96 // pred_check
        _
      $region135: #{tpu_custom_call.1} parent=96 // pred_check_branch
        %603 = sbr.rel target = $region137
      $region136: #{tpu_custom_call.1} parent=96 // pred_region
        %604 = sst [smem:[#allocation12]] [#allocation63]
        %605 = sst [smem:[#allocation13]] [#allocation62]
      $region137: #{tpu_custom_call.1} parent=96 // pred_fallthru
        _
      %607 = shalt.err (0)
      %s609 = sshll.u32 %s601, 4
      %s610 = int_to_ptr.vmem [resolvable:$true] %s609
      %612 = dma.hbm_to_vmem [thread:$0]  %s599, 16, %s610, %s448
      %s613 = sadd.s32 %s442, 10
      %s614 = sld [smem:[#allocation5 + %s613]]
      %s615 = smul.addr %s614, 16
      %s616 = scalar_lea.hbm %s7, %s615
      %s617 = sadd.s32 10, %s446
      %s618 = scalar_lea.vmem [#allocation2], %s617
      // Predicated region
      $region138: #{tpu_custom_call.1} parent=96 // pred_check
        _
      $region139: #{tpu_custom_call.1} parent=96 // pred_check_branch
        %620 = sbr.rel target = $region141
      $region140: #{tpu_custom_call.1} parent=96 // pred_region
        %621 = sst [smem:[#allocation12]] [#allocation65]
        %622 = sst [smem:[#allocation13]] [#allocation64]
      $region141: #{tpu_custom_call.1} parent=96 // pred_fallthru
        _
      %624 = shalt.err (0)
      %s626 = sshll.u32 %s618, 4
      %s627 = int_to_ptr.vmem [resolvable:$true] %s626
      %629 = dma.hbm_to_vmem [thread:$0]  %s616, 16, %s627, %s448
      %s630 = sadd.s32 %s442, 11
      %s631 = sld [smem:[#allocation5 + %s630]]
      %s632 = smul.addr %s631, 16
      %s633 = scalar_lea.hbm %s7, %s632
      %s634 = sadd.s32 11, %s446
      %s635 = scalar_lea.vmem [#allocation2], %s634
      // Predicated region
      $region142: #{tpu_custom_call.1} parent=96 // pred_check
        _
      $region143: #{tpu_custom_call.1} parent=96 // pred_check_branch
        %637 = sbr.rel target = $region145
      $region144: #{tpu_custom_call.1} parent=96 // pred_region
        %638 = sst [smem:[#allocation12]] [#allocation67]
        %639 = sst [smem:[#allocation13]] [#allocation66]
      $region145: #{tpu_custom_call.1} parent=96 // pred_fallthru
        _
      %641 = shalt.err (0)
      %s643 = sshll.u32 %s635, 4
      %s644 = int_to_ptr.vmem [resolvable:$true] %s643
      %646 = dma.hbm_to_vmem [thread:$0]  %s633, 16, %s644, %s448
      %s647 = sadd.s32 %s442, 12
      %s648 = sld [smem:[#allocation5 + %s647]]
      %s649 = smul.addr %s648, 16
      %s650 = scalar_lea.hbm %s7, %s649
      %s651 = sadd.s32 12, %s446
      %s652 = scalar_lea.vmem [#allocation2], %s651
      // Predicated region
      $region146: #{tpu_custom_call.1} parent=96 // pred_check
        _
      $region147: #{tpu_custom_call.1} parent=96 // pred_check_branch
        %654 = sbr.rel target = $region149
      $region148: #{tpu_custom_call.1} parent=96 // pred_region
        %655 = sst [smem:[#allocation12]] [#allocation69]
        %656 = sst [smem:[#allocation13]] [#allocation68]
      $region149: #{tpu_custom_call.1} parent=96 // pred_fallthru
        _
      %658 = shalt.err (0)
      %s660 = sshll.u32 %s652, 4
      %s661 = int_to_ptr.vmem [resolvable:$true] %s660
      %663 = dma.hbm_to_vmem [thread:$0]  %s650, 16, %s661, %s448
      %s664 = sadd.s32 %s442, 13
      %s665 = sld [smem:[#allocation5 + %s664]]
      %s666 = smul.addr %s665, 16
      %s667 = scalar_lea.hbm %s7, %s666
      %s668 = sadd.s32 13, %s446
      %s669 = scalar_lea.vmem [#allocation2], %s668
      // Predicated region
      $region150: #{tpu_custom_call.1} parent=96 // pred_check
        _
      $region151: #{tpu_custom_call.1} parent=96 // pred_check_branch
        %671 = sbr.rel target = $region153
      $region152: #{tpu_custom_call.1} parent=96 // pred_region
        %672 = sst [smem:[#allocation12]] [#allocation71]
        %673 = sst [smem:[#allocation13]] [#allocation70]
      $region153: #{tpu_custom_call.1} parent=96 // pred_fallthru
        _
      %675 = shalt.err (0)
      %s677 = sshll.u32 %s669, 4
      %s678 = int_to_ptr.vmem [resolvable:$true] %s677
      %680 = dma.hbm_to_vmem [thread:$0]  %s667, 16, %s678, %s448
      %s681 = sadd.s32 %s442, 14
      %s682 = sld [smem:[#allocation5 + %s681]]
      %s683 = smul.addr %s682, 16
      %s684 = scalar_lea.hbm %s7, %s683
      %s685 = sadd.s32 14, %s446
      %s686 = scalar_lea.vmem [#allocation2], %s685
      // Predicated region
      $region154: #{tpu_custom_call.1} parent=96 // pred_check
        _
      $region155: #{tpu_custom_call.1} parent=96 // pred_check_branch
        %688 = sbr.rel target = $region157
      $region156: #{tpu_custom_call.1} parent=96 // pred_region
        %689 = sst [smem:[#allocation12]] [#allocation73]
        %690 = sst [smem:[#allocation13]] [#allocation72]
      $region157: #{tpu_custom_call.1} parent=96 // pred_fallthru
        _
      %692 = shalt.err (0)
      %s694 = sshll.u32 %s686, 4
      %s695 = int_to_ptr.vmem [resolvable:$true] %s694
      %697 = dma.hbm_to_vmem [thread:$0]  %s684, 16, %s695, %s448
      %s698 = sadd.s32 %s442, 15
      %s699 = sld [smem:[#allocation5 + %s698]]
      %s700 = smul.addr %s699, 16
      %s701 = scalar_lea.hbm %s7, %s700
      %s702 = sadd.s32 15, %s446
      %s703 = scalar_lea.vmem [#allocation2], %s702
      // Predicated region
      $region158: #{tpu_custom_call.1} parent=96 // pred_check
        _
      $region159: #{tpu_custom_call.1} parent=96 // pred_check_branch
        %705 = sbr.rel target = $region161
      $region160: #{tpu_custom_call.1} parent=96 // pred_region
        %706 = sst [smem:[#allocation12]] [#allocation75]
        %707 = sst [smem:[#allocation13]] [#allocation74]
      $region161: #{tpu_custom_call.1} parent=96 // pred_fallthru
        _
      %709 = shalt.err (0)
      %s711 = sshll.u32 %s703, 4
      %s712 = int_to_ptr.vmem [resolvable:$true] %s711
      %714 = dma.hbm_to_vmem [thread:$0]  %s701, 16, %s712, %s448
    $region97: #{tpu_custom_call.1} parent=1 // pred_fallthru
      _
    %s715 = smul.u32 %s91, 16
    %s716 = scalar_lea.vmem [#allocation2], %s715
    %v717 = vld [vmem:[%s716] sm:$0xff]
    %v718 = vld [vmem:[%s716 + $0x8] sm:$0xff]
    %v719 = vld [vmem:[%s3] sm:$0xf]
    %v720 = vld [vmem:[%s3 + $0x4] sm:$0xf]
    %v721 = vunpack.c.l.bf16 %v719
    %v722 = vunpack.c.l.bf16 %v720
    %v723 = vadd.f32 %v717, %v721
    %v724 = vadd.f32 %v718, %v722
    %v725 = vld [vmem:[%s6] sm:$0xf]
    %v726 = vunpack.c.l.bf16 %v725
    %v727 = vld [vmem:[%s76] sm:$0xff]
    %v728 = vld [vmem:[%s76 + $0x8] sm:$0xff]
    %vm729 = vcmp.eq.s32.totalorder %v727, 0
    %vm730 = vcmp.eq.s32.totalorder %v728, 0
    %v731 = vsel %vm729, 1, 0
    %v732 = vsel %vm730, 1, 0
    %733 = vset.pattern.permute.xlu0 0
    %734 = vperm.xlu0 %733, %v731
    %v735 = vpop.permute.xlu0 %734
    %736 = vset.pattern.permute.xlu0 0
    %737 = vperm.xlu0 %736, %v732
    %v738 = vpop.permute.xlu0 %737
    %vm739 = vcmp.eq.s32.totalorder %v735, 1
    %vm740 = vcmp.eq.s32.totalorder %v738, 1
    %v741 = vlaneseq
    %v742 = vshrl.u32 %v741, 7
    %v743 = vsub.s32 0, %v742
    %v744 = vrot.slane %v726, %v743
    %v745 = vsel %vm739, %v744, 0.0
    %v746 = vsel %vm740, %v744, 0.0
    %v747 = vadd.f32 %v723, %v745
    %v748 = vadd.f32 %v724, %v746
    %vm749 = vcmp.eq.s32.totalorder %v727, 1
    %vm750 = vcmp.eq.s32.totalorder %v728, 1
    %v751 = vsel %vm749, 1, 0
    %v752 = vsel %vm750, 1, 0
    %753 = vset.pattern.permute.xlu0 0
    %754 = vperm.xlu0 %753, %v751
    %v755 = vpop.permute.xlu0 %754
    %756 = vset.pattern.permute.xlu0 0
    %757 = vperm.xlu0 %756, %v752
    %v758 = vpop.permute.xlu0 %757
    %vm759 = vcmp.eq.s32.totalorder %v755, 1
    %vm760 = vcmp.eq.s32.totalorder %v758, 1
    %v761 = vlaneseq
    %v762 = vshrl.u32 %v761, 7
    %v763 = vsub.s32 1, %v762
    %v764 = vrot.slane %v726, %v763
    %v765 = vsel %vm759, %v764, 0.0
    %v766 = vsel %vm760, %v764, 0.0
    %v767 = vadd.f32 %v747, %v765
    %v768 = vadd.f32 %v748, %v766
    %vm769 = vcmp.eq.s32.totalorder %v727, 2
    %vm770 = vcmp.eq.s32.totalorder %v728, 2
    %v771 = vsel %vm769, 1, 0
    %v772 = vsel %vm770, 1, 0
    %773 = vset.pattern.permute.xlu0 0
    %774 = vperm.xlu0 %773, %v771
    %v775 = vpop.permute.xlu0 %774
    %776 = vset.pattern.permute.xlu0 0
    %777 = vperm.xlu0 %776, %v772
    %v778 = vpop.permute.xlu0 %777
    %vm779 = vcmp.eq.s32.totalorder %v775, 1
    %vm780 = vcmp.eq.s32.totalorder %v778, 1
    %v781 = vlaneseq
    %v782 = vshrl.u32 %v781, 7
    %v783 = vsub.s32 2, %v782
    %v784 = vrot.slane %v726, %v783
    %v785 = vsel %vm779, %v784, 0.0
    %v786 = vsel %vm780, %v784, 0.0
    %v787 = vadd.f32 %v767, %v785
    %v788 = vadd.f32 %v768, %v786
    %vm789 = vcmp.eq.s32.totalorder %v727, 3
    %vm790 = vcmp.eq.s32.totalorder %v728, 3
    %v791 = vsel %vm789, 1, 0
    %v792 = vsel %vm790, 1, 0
    %793 = vset.pattern.permute.xlu0 0
    %794 = vperm.xlu0 %793, %v791
    %v795 = vpop.permute.xlu0 %794
    %796 = vset.pattern.permute.xlu0 0
    %797 = vperm.xlu0 %796, %v792
    %v798 = vpop.permute.xlu0 %797
    %vm799 = vcmp.eq.s32.totalorder %v795, 1
    %vm800 = vcmp.eq.s32.totalorder %v798, 1
    %v801 = vlaneseq
    %v802 = vshrl.u32 %v801, 7
    %v803 = vsub.s32 3, %v802
    %v804 = vrot.slane %v726, %v803
    %v805 = vsel %vm799, %v804, 0.0
    %v806 = vsel %vm800, %v804, 0.0
    %v807 = vadd.f32 %v787, %v805
    %v808 = vadd.f32 %v788, %v806
    %vm809 = vcmp.eq.s32.totalorder %v727, 4
    %vm810 = vcmp.eq.s32.totalorder %v728, 4
    %v811 = vsel %vm809, 1, 0
    %v812 = vsel %vm810, 1, 0
    %813 = vset.pattern.permute.xlu0 0
    %814 = vperm.xlu0 %813, %v811
    %v815 = vpop.permute.xlu0 %814
    %816 = vset.pattern.permute.xlu0 0
    %817 = vperm.xlu0 %816, %v812
    %v818 = vpop.permute.xlu0 %817
    %vm819 = vcmp.eq.s32.totalorder %v815, 1
    %vm820 = vcmp.eq.s32.totalorder %v818, 1
    %v821 = vlaneseq
    %v822 = vshrl.u32 %v821, 7
    %v823 = vsub.s32 4, %v822
    %v824 = vrot.slane %v726, %v823
    %v825 = vsel %vm819, %v824, 0.0
    %v826 = vsel %vm820, %v824, 0.0
    %v827 = vadd.f32 %v807, %v825
    %v828 = vadd.f32 %v808, %v826
    %vm829 = vcmp.eq.s32.totalorder %v727, 5
    %vm830 = vcmp.eq.s32.totalorder %v728, 5
    %v831 = vsel %vm829, 1, 0
    %v832 = vsel %vm830, 1, 0
    %833 = vset.pattern.permute.xlu0 0
    %834 = vperm.xlu0 %833, %v831
    %v835 = vpop.permute.xlu0 %834
    %836 = vset.pattern.permute.xlu0 0
    %837 = vperm.xlu0 %836, %v832
    %v838 = vpop.permute.xlu0 %837
    %vm839 = vcmp.eq.s32.totalorder %v835, 1
    %vm840 = vcmp.eq.s32.totalorder %v838, 1
    %v841 = vlaneseq
    %v842 = vshrl.u32 %v841, 7
    %v843 = vsub.s32 5, %v842
    %v844 = vrot.slane %v726, %v843
    %v845 = vsel %vm839, %v844, 0.0
    %v846 = vsel %vm840, %v844, 0.0
    %v847 = vadd.f32 %v827, %v845
    %v848 = vadd.f32 %v828, %v846
    %vm849 = vcmp.eq.s32.totalorder %v727, 6
    %vm850 = vcmp.eq.s32.totalorder %v728, 6
    %v851 = vsel %vm849, 1, 0
    %v852 = vsel %vm850, 1, 0
    %853 = vset.pattern.permute.xlu0 0
    %854 = vperm.xlu0 %853, %v851
    %v855 = vpop.permute.xlu0 %854
    %856 = vset.pattern.permute.xlu0 0
    %857 = vperm.xlu0 %856, %v852
    %v858 = vpop.permute.xlu0 %857
    %vm859 = vcmp.eq.s32.totalorder %v855, 1
    %vm860 = vcmp.eq.s32.totalorder %v858, 1
    %v861 = vlaneseq
    %v862 = vshrl.u32 %v861, 7
    %v863 = vsub.s32 6, %v862
    %v864 = vrot.slane %v726, %v863
    %v865 = vsel %vm859, %v864, 0.0
    %v866 = vsel %vm860, %v864, 0.0
    %v867 = vadd.f32 %v847, %v865
    %v868 = vadd.f32 %v848, %v866
    %vm869 = vcmp.eq.s32.totalorder %v727, 7
    %vm870 = vcmp.eq.s32.totalorder %v728, 7
    %v871 = vsel %vm869, 1, 0
    %v872 = vsel %vm870, 1, 0
    %873 = vset.pattern.permute.xlu0 0
    %874 = vperm.xlu0 %873, %v871
    %v875 = vpop.permute.xlu0 %874
    %876 = vset.pattern.permute.xlu0 0
    %877 = vperm.xlu0 %876, %v872
    %v878 = vpop.permute.xlu0 %877
    %vm879 = vcmp.eq.s32.totalorder %v875, 1
    %vm880 = vcmp.eq.s32.totalorder %v878, 1
    %v881 = vlaneseq
    %v882 = vshrl.u32 %v881, 7
    %v883 = vsub.s32 7, %v882
    %v884 = vrot.slane %v726, %v883
    %v885 = vsel %vm879, %v884, 0.0
    %v886 = vsel %vm880, %v884, 0.0
    %v887 = vadd.f32 %v867, %v885
    %v888 = vadd.f32 %v868, %v886
    %889 = vadd.xlane.f32.xlu0 %v887
    %v890 = vpop.xlane.xlu0 %889
    %891 = vadd.xlane.f32.xlu0 %v888
    %v892 = vpop.xlane.xlu0 %891
    %v893 = vrcp.pop 128.0
    %v894 = vmul.f32 %v890, %v893
    %v895 = vmul.f32 %v892, %v893
    %v896 = vsub.f32 %v887, %v894
    %v897 = vsub.f32 %v888, %v895
    %v898 = vmul.f32 %v896, %v896
    %v899 = vmul.f32 %v897, %v897
    %900 = vadd.xlane.f32.xlu0 %v898
    %v901 = vpop.xlane.xlu0 %900
    %902 = vadd.xlane.f32.xlu0 %v899
    %v903 = vpop.xlane.xlu0 %902
    %v904 = vmul.f32 %v901, %v893
    %v905 = vmul.f32 %v903, %v893
    %v906 = vadd.f32 %v904, 1e-12
    %v907 = vadd.f32 %v905, 1e-12
    %v908 = vrsqrt.pop %v906
    %v909 = vrsqrt.pop %v907
    %v910 = vmul.f32 %v896, %v908
    %v911 = vmul.f32 %v897, %v909
    %v912 = vld [vmem:[%s4] sm:$0x1]
    %v914 = vlaneseq
    %v915 = vshrl.u32 %v914, 7
    %v916 = vsub.s32 0, %v915
    %v917 = vrot.slane %v912, %v916
    %v919 = vmul.f32 %v910, %v917
    %v920 = vmul.f32 %v911, %v917
    %v921 = vld [vmem:[%s5] sm:$0x1]
    %v923 = vlaneseq
    %v924 = vshrl.u32 %v923, 7
    %v925 = vsub.s32 0, %v924
    %v926 = vrot.slane %v921, %v925
    %v928 = vadd.f32 %v919, %v926
    %v929 = vadd.f32 %v920, %v926
    %930 = vst [vmem:[#allocation6] sm:$0xff] %v928
    %931 = vst [vmem:[#allocation6 + $0x8] sm:$0xff] %v929
    %v932 = vld [vmem:[%s68] sm:$0xff]
    %v933 = vld [vmem:[%s68 + $0x8] sm:$0xff]
    %935 = vset.pattern.permute.xlu0 0
    %936 = vperm.xlu0 %935, %v932
    %v937 = vpop.permute.xlu0 %936
    %940 = vset.pattern.permute.xlu0 0
    %941 = vperm.xlu0 %940, %v933
    %v942 = vpop.permute.xlu0 %941
    %v944 = vmul.f32 %v928, %v937
    %v945 = vmul.f32 %v929, %v942
    %v946 = vrot.slane %v944, 4
    %v947 = vadd.f32 %v944, %v946
    %v948 = vrot.slane %v947, 2
    %v949 = vadd.f32 %v947, %v948
    %v950 = vrot.slane %v949, 1
    %v951 = vadd.f32 %v949, %v950
    %vm952 = vcmask 7168
    %v953 = vsel %vm952, %v932, 0.0
    %954 = vadd.xlane.f32.xlu0 %v953
    %v955 = vpop.xlane.xlu0 %954
    %v956 = vrot.slane %v955, 4
    %v957 = vadd.f32 %v955, %v956
    %v958 = vrot.slane %v957, 2
    %v959 = vadd.f32 %v957, %v958
    %v960 = vrot.slane %v959, 1
    %v961 = vadd.f32 %v959, %v960
    %s962 = vtos %v961
    %s963 = smax.f32 %s962, 1e-09
    %v964 = vstv %s963
    %v965 = vrcp.pop %v964
    %v966 = vmul.f32 %v951, %v965
    %967 = vst [vmem:[#allocation8] sm:$0x1] %v966
    %v968 = vrot.slane %v945, 4
    %v969 = vadd.f32 %v945, %v968
    %v970 = vrot.slane %v969, 2
    %v971 = vadd.f32 %v969, %v970
    %v972 = vrot.slane %v971, 1
    %v973 = vadd.f32 %v971, %v972
    %v974 = vsel %vm952, %v933, 0.0
    %975 = vadd.xlane.f32.xlu0 %v974
    %v976 = vpop.xlane.xlu0 %975
    %v977 = vrot.slane %v976, 4
    %v978 = vadd.f32 %v976, %v977
    %v979 = vrot.slane %v978, 2
    %v980 = vadd.f32 %v978, %v979
    %v981 = vrot.slane %v980, 1
    %v982 = vadd.f32 %v980, %v981
    %s983 = vtos %v982
    %s984 = smax.f32 %s983, 1e-09
    %v985 = vstv %s984
    %v986 = vrcp.pop %v985
    %v987 = vmul.f32 %v973, %v986
    %s988 = scalar_lea.vmem [#allocation8], 1
    %989 = vst [vmem:[%s988] sm:$0x1] %v987
    // Predicated region
    $region162: #{tpu_custom_call.1} parent=1 // pred_check
      _
    $region163: #{tpu_custom_call.1} parent=1 // pred_check_branch
      %991 = sbr.rel (0) target = $region165
    $region164: #{tpu_custom_call.1} parent=1 // pred_region
      %s992 = sadd.s32 0, 0
      %s993 = smul.u32 2, %s992
      %s995 = ssub.s32 256, 256
      %996 = vsyncadd [#allocation7], %s995
      %s997 = smul.addr %s993, 128
      %s998 = scalar_lea.hbm %s8, %s997
      %s999 = sshll.u32 [#allocation6], 4
      %s1000 = int_to_ptr.vmem [resolvable:$true] %s999
      %1005 = dma.vmem_to_hbm [thread:$0]  %s1000, 256, %s998, [#allocation7], 128, 128, 8
    $region165: #{tpu_custom_call.1} parent=1 // pred_fallthru
      _
    // Predicated region
    $region166: #{tpu_custom_call.1} parent=1 // pred_check
      _
    $region167: #{tpu_custom_call.1} parent=1 // pred_check_branch
      %1007 = sbr.rel (0) target = $region169
    $region168: #{tpu_custom_call.1} parent=1 // pred_region
      %s1008 = sadd.s32 0, 0
      %s1009 = smul.u32 2, %s1008
      %s1011 = ssub.s32 32, 32
      %1012 = vsyncadd [#allocation9], %s1011
      %s1013 = smul.addr %s1009, 16
      %s1014 = scalar_lea.hbm %s9, %s1013
      %s1015 = sshll.u32 [#allocation8], 4
      %s1016 = int_to_ptr.vmem [resolvable:$true] %s1015
      %1021 = dma.vmem_to_hbm [thread:$0]  %s1016, 32, %s1014, [#allocation9], 16, 16, 1
    $region169: #{tpu_custom_call.1} parent=1 // pred_fallthru
      _
    // Predicated region
    $region170: #{tpu_custom_call.1} parent=1 // pred_check
      _
    $region171: #{tpu_custom_call.1} parent=1 // pred_check_branch
      %1023 = sbr.rel (0) target = $region173
    $region172: #{tpu_custom_call.1} parent=1 // pred_region
      %1024 = dma.done [#allocation7], 256
    $region173: #{tpu_custom_call.1} parent=1 // pred_fallthru
      _
    // Predicated region
    $region174: #{tpu_custom_call.1} parent=1 // pred_check
      _
    $region175: #{tpu_custom_call.1} parent=1 // pred_check_branch
      %1026 = sbr.rel (0) target = $region177
    $region176: #{tpu_custom_call.1} parent=1 // pred_region
      %1027 = dma.done [#allocation9], 32
    $region177: #{tpu_custom_call.1} parent=1 // pred_fallthru
      _
    %1028 = vsyncpa [#allocation7], 1
    %1029 = vsyncpa [#allocation9], 1
  %1030 = vsyncmov [#allocation3]
  %s1031 = vpop.sfrf %1030
  %p1032 = scmp.eq.s32.totalorder %s1031, 0
  %p1033 = pneg %p1032
  %1035 = shalt.err (%p1033)
  %s1036 = scalar_lea.sflag [#allocation3], 1
  %1037 = vsyncmov %s1036
  %s1038 = vpop.sfrf %1037
  %p1039 = scmp.eq.s32.totalorder %s1038, 0
  %p1040 = pneg %p1039
  %1042 = shalt.err (%p1040)

</llo_original>
